<compile_context>
chip_gen: v7x
topology: tpu7x:2x2x1
jax: 0.10.0
libtpu: 0.0.40
codegen_flags: <defaults>
</compile_context>

<pallas_src>
import functools

import jax
import jax.numpy as jnp
from jax.experimental import pallas as pl
from jax.experimental.pallas import tpu as pltpu

D_IN, H1, H2, D_OUT = 3, 8, 8, 3
LANES = 128


def _cdiv(a, b):
    return (a + b - 1) // b


def _round_up(n, m):
    return _cdiv(n, m) * m


def lorenz_ann_kernel(w1_ref, b1_ref, w2_ref, b2_ref, w3_ref, b3_ref,
                      xt_ref, ot_ref, *, strip_rows):
    # xt_ref / ot_ref: (3, TBr, 128) VMEM blocks; weights/biases: SMEM scalars.
    tbr = xt_ref.shape[1]
    n_strips = tbr // strip_rows

    # Hoist all weight/bias scalar reads out of the strip loop (loop-invariant).
    w1 = [[w1_ref[j, k] for k in range(D_IN)] for j in range(H1)]
    b1 = [b1_ref[j] for j in range(H1)]
    w2 = [[w2_ref[j, k] for k in range(H1)] for j in range(H2)]
    b2 = [b2_ref[j] for j in range(H2)]
    w3 = [[w3_ref[j, k] for k in range(H2)] for j in range(D_OUT)]
    b3 = [b3_ref[j] for j in range(D_OUT)]

    @pl.loop(0, n_strips)
    def _(s):
        r0 = pl.multiple_of(s * strip_rows, strip_rows)
        rows = pl.ds(r0, strip_rows)

        # x strip: 3 tiles of (strip_rows, 128), kept in vregs.
        xs = [xt_ref[k, rows, :] for k in range(D_IN)]

        # Layer 1: Linear(3, 8) + ReLU   (W1 is PyTorch (out, in) = (8, 3))
        h1 = []
        for j in range(H1):
            acc = xs[0] * w1[j][0]
            for k in range(1, D_IN):
                acc = acc + xs[k] * w1[j][k]
            h1.append(jnp.maximum(acc + b1[j], 0.0))

        # Layer 2: Linear(8, 8) + ReLU   (W2 is (8, 8))
        h2 = []
        for j in range(H2):
            acc = h1[0] * w2[j][0]
            for k in range(1, H1):
                acc = acc + h1[k] * w2[j][k]
            h2.append(jnp.maximum(acc + b2[j], 0.0))

        # Layer 3: Linear(8, 3) — store each output row directly (lane-dense).
        for j in range(D_OUT):
            acc = h2[0] * w3[j][0]
            for k in range(1, H2):
                acc = acc + h2[k] * w3[j][k]
            ot_ref[j, rows, :] = acc + b3[j]


def _choose_tiling(n_rows, block_rows):
    """Pick (tile_rows, padded_rows).

    tile_rows is a multiple of 8 whenever the grid has >1 step (BlockSpec
    (8, 128) rule); the grid is kept >= 2 steps when the batch allows so the
    'parallel' axis actually spans both v7x TensorCores."""
    if n_rows <= block_rows:
        if n_rows >= 16:
            tbr = _round_up(_cdiv(n_rows, 2), 8)   # 2 grid steps
        else:
            return n_rows, n_rows                  # single full-extent block
    else:
        tbr = block_rows
    return tbr, _round_up(n_rows, tbr)


def lorenz_ann_forward(x, params, *, block_rows=512):
    """x: (B, 3). params: PyTorch-layout weights W:(out,in), b:(out,). -> (B, 3)."""
    B = x.shape[0]
    n_rows = _cdiv(B, LANES)
    tbr, n_rows_pad = _choose_tiling(n_rows, block_rows)
    b_pad = n_rows_pad * LANES

    # Feature-major, lane-dense layout: (3, n_rows_pad, 128), batch on lanes.
    # TODO(synk): if the caller can supply/accept feature-major (3, B) data,
    # these two wrapper transposes (one extra HBM pass each) disappear.
    xt = jnp.transpose(x).astype(jnp.float32)              # (3, B)
    if b_pad != B:
        xt = jnp.pad(xt, ((0, 0), (0, b_pad - B)))
    xt = xt.reshape(D_IN, n_rows_pad, LANES)

    strip = 8 if tbr % 8 == 0 else tbr
    kernel = functools.partial(lorenz_ann_kernel, strip_rows=strip)

    smem = pl.BlockSpec(memory_space=pltpu.MemorySpace.SMEM)

    out_t = pl.pallas_call(
        kernel,
        out_shape=jax.ShapeDtypeStruct((D_OUT, n_rows_pad, LANES), jnp.float32),
        grid=(n_rows_pad // tbr,),
        in_specs=[smem, smem, smem, smem, smem, smem,       # weights/biases once
                  pl.BlockSpec((D_IN, tbr, LANES), lambda i: (0, i, 0))],
        out_specs=pl.BlockSpec((D_OUT, tbr, LANES), lambda i: (0, i, 0)),
        compiler_params=pltpu.CompilerParams(
            dimension_semantics=("parallel",),              # megacore on v7x
        ),
    )(params["W1"], params["b1"], params["W2"], params["b2"],
      params["W3"], params["b3"], xt)

    return out_t.reshape(D_OUT, b_pad)[:, :B].T             # back to (B, 3)


def init_params(key):
    """Deterministic init matching PyTorch Linear shapes (out, in) / (out,)."""
    k1, k2, k3, k4, k5, k6 = jax.random.split(key, 6)

    def uniform(k, shape, fan_in):
        bound = 1.0 / jnp.sqrt(jnp.float32(fan_in))
        return jax.random.uniform(k, shape, jnp.float32, -bound, bound)

    return {
        "W1": uniform(k1, (H1, D_IN), D_IN), "b1": uniform(k2, (H1,), D_IN),
        "W2": uniform(k3, (H2, H1), H1),     "b2": uniform(k4, (H2,), H1),
        "W3": uniform(k5, (D_OUT, H2), H2),  "b3": uniform(k6, (D_OUT,), H2),
    }


def ref_forward(x, p):
    h = jnp.maximum(x @ p["W1"].T + p["b1"], 0.0)
    h = jnp.maximum(h @ p["W2"].T + p["b2"], 0.0)
    return h @ p["W3"].T + p["b3"]


if __name__ == "__main__":
    key = jax.random.PRNGKey(0)
    pkey, xkey, xkey2 = jax.random.split(key, 3)
    params = init_params(pkey)

    # Small shape consistent with the module: batch=8, 3 input features.
    x = jax.random.normal(xkey, (8, 3), jnp.float32)
    out = jax.block_until_ready(lorenz_ann_forward(x, params))
    assert out.shape == (8, 3)
    assert jnp.allclose(out, ref_forward(x, params), atol=1e-5, rtol=1e-5)

    # Also exercise the multi-step grid + in-register strip-loop path.
    x2 = jax.random.normal(xkey2, (2048, 3), jnp.float32)
    out2 = jax.block_until_ready(lorenz_ann_forward(x2, params))
    assert out2.shape == (2048, 3)
    assert jnp.allclose(out2, ref_forward(x2, params), atol=1e-5, rtol=1e-5)

    print("KERNEL_OK")
</pallas_src>

<mosaic_0001>
module attributes {stable_mosaic.version = 11 : i64} {
  func.func @lorenz_ann_kernel(%arg0: i32, %arg1: memref<8x3xf32, #tpu.memory_space<smem>>, %arg2: memref<8xf32, #tpu.memory_space<smem>>, %arg3: memref<8x8xf32, #tpu.memory_space<smem>>, %arg4: memref<8xf32, #tpu.memory_space<smem>>, %arg5: memref<3x8xf32, #tpu.memory_space<smem>>, %arg6: memref<3xf32, #tpu.memory_space<smem>>, %arg7: memref<3x1x128xf32, #tpu.memory_space<vmem>>, %arg8: memref<3x1x128xf32, #tpu.memory_space<vmem>>) attributes {dimension_semantics = [#tpu.dimension_semantics<parallel>], iteration_bounds = array<i64: 1>, scalar_prefetch = 0 : i64, scratch_operands = 0 : i64, tpu.core_type = #tpu.core_type<tc>, window_params = [{transform_indices = @transform_0, window_bounds = array<i64: 8, 3>}, {transform_indices = @transform_1, window_bounds = array<i64: 8>}, {transform_indices = @transform_2, window_bounds = array<i64: 8, 8>}, {transform_indices = @transform_3, window_bounds = array<i64: 8>}, {transform_indices = @transform_4, window_bounds = array<i64: 3, 8>}, {transform_indices = @transform_5, window_bounds = array<i64: 3>}, {transform_indices = @transform_6, window_bounds = array<i64: 3, 1, 128>}, {transform_indices = @transform_7, window_bounds = array<i64: 3, 1, 128>}]} {
    %c0 = arith.constant 0 : index
    %c0_0 = arith.constant 0 : index
    %0 = memref.load %arg1[%c0, %c0_0] : memref<8x3xf32, #tpu.memory_space<smem>>
    %c0_1 = arith.constant 0 : index
    %c1 = arith.constant 1 : index
    %1 = memref.load %arg1[%c0_1, %c1] : memref<8x3xf32, #tpu.memory_space<smem>>
    %c0_2 = arith.constant 0 : index
    %c2 = arith.constant 2 : index
    %2 = memref.load %arg1[%c0_2, %c2] : memref<8x3xf32, #tpu.memory_space<smem>>
    %c1_3 = arith.constant 1 : index
    %c0_4 = arith.constant 0 : index
    %3 = memref.load %arg1[%c1_3, %c0_4] : memref<8x3xf32, #tpu.memory_space<smem>>
    %c1_5 = arith.constant 1 : index
    %c1_6 = arith.constant 1 : index
    %4 = memref.load %arg1[%c1_5, %c1_6] : memref<8x3xf32, #tpu.memory_space<smem>>
    %c1_7 = arith.constant 1 : index
    %c2_8 = arith.constant 2 : index
    %5 = memref.load %arg1[%c1_7, %c2_8] : memref<8x3xf32, #tpu.memory_space<smem>>
    %c2_9 = arith.constant 2 : index
    %c0_10 = arith.constant 0 : index
    %6 = memref.load %arg1[%c2_9, %c0_10] : memref<8x3xf32, #tpu.memory_space<smem>>
    %c2_11 = arith.constant 2 : index
    %c1_12 = arith.constant 1 : index
    %7 = memref.load %arg1[%c2_11, %c1_12] : memref<8x3xf32, #tpu.memory_space<smem>>
    %c2_13 = arith.constant 2 : index
    %c2_14 = arith.constant 2 : index
    %8 = memref.load %arg1[%c2_13, %c2_14] : memref<8x3xf32, #tpu.memory_space<smem>>
    %c3 = arith.constant 3 : index
    %c0_15 = arith.constant 0 : index
    %9 = memref.load %arg1[%c3, %c0_15] : memref<8x3xf32, #tpu.memory_space<smem>>
    %c3_16 = arith.constant 3 : index
    %c1_17 = arith.constant 1 : index
    %10 = memref.load %arg1[%c3_16, %c1_17] : memref<8x3xf32, #tpu.memory_space<smem>>
    %c3_18 = arith.constant 3 : index
    %c2_19 = arith.constant 2 : index
    %11 = memref.load %arg1[%c3_18, %c2_19] : memref<8x3xf32, #tpu.memory_space<smem>>
    %c4 = arith.constant 4 : index
    %c0_20 = arith.constant 0 : index
    %12 = memref.load %arg1[%c4, %c0_20] : memref<8x3xf32, #tpu.memory_space<smem>>
    %c4_21 = arith.constant 4 : index
    %c1_22 = arith.constant 1 : index
    %13 = memref.load %arg1[%c4_21, %c1_22] : memref<8x3xf32, #tpu.memory_space<smem>>
    %c4_23 = arith.constant 4 : index
    %c2_24 = arith.constant 2 : index
    %14 = memref.load %arg1[%c4_23, %c2_24] : memref<8x3xf32, #tpu.memory_space<smem>>
    %c5 = arith.constant 5 : index
    %c0_25 = arith.constant 0 : index
    %15 = memref.load %arg1[%c5, %c0_25] : memref<8x3xf32, #tpu.memory_space<smem>>
    %c5_26 = arith.constant 5 : index
    %c1_27 = arith.constant 1 : index
    %16 = memref.load %arg1[%c5_26, %c1_27] : memref<8x3xf32, #tpu.memory_space<smem>>
    %c5_28 = arith.constant 5 : index
    %c2_29 = arith.constant 2 : index
    %17 = memref.load %arg1[%c5_28, %c2_29] : memref<8x3xf32, #tpu.memory_space<smem>>
    %c6 = arith.constant 6 : index
    %c0_30 = arith.constant 0 : index
    %18 = memref.load %arg1[%c6, %c0_30] : memref<8x3xf32, #tpu.memory_space<smem>>
    %c6_31 = arith.constant 6 : index
    %c1_32 = arith.constant 1 : index
    %19 = memref.load %arg1[%c6_31, %c1_32] : memref<8x3xf32, #tpu.memory_space<smem>>
    %c6_33 = arith.constant 6 : index
    %c2_34 = arith.constant 2 : index
    %20 = memref.load %arg1[%c6_33, %c2_34] : memref<8x3xf32, #tpu.memory_space<smem>>
    %c7 = arith.constant 7 : index
    %c0_35 = arith.constant 0 : index
    %21 = memref.load %arg1[%c7, %c0_35] : memref<8x3xf32, #tpu.memory_space<smem>>
    %c7_36 = arith.constant 7 : index
    %c1_37 = arith.constant 1 : index
    %22 = memref.load %arg1[%c7_36, %c1_37] : memref<8x3xf32, #tpu.memory_space<smem>>
    %c7_38 = arith.constant 7 : index
    %c2_39 = arith.constant 2 : index
    %23 = memref.load %arg1[%c7_38, %c2_39] : memref<8x3xf32, #tpu.memory_space<smem>>
    %c0_40 = arith.constant 0 : index
    %24 = memref.load %arg2[%c0_40] : memref<8xf32, #tpu.memory_space<smem>>
    %c1_41 = arith.constant 1 : index
    %25 = memref.load %arg2[%c1_41] : memref<8xf32, #tpu.memory_space<smem>>
    %c2_42 = arith.constant 2 : index
    %26 = memref.load %arg2[%c2_42] : memref<8xf32, #tpu.memory_space<smem>>
    %c3_43 = arith.constant 3 : index
    %27 = memref.load %arg2[%c3_43] : memref<8xf32, #tpu.memory_space<smem>>
    %c4_44 = arith.constant 4 : index
    %28 = memref.load %arg2[%c4_44] : memref<8xf32, #tpu.memory_space<smem>>
    %c5_45 = arith.constant 5 : index
    %29 = memref.load %arg2[%c5_45] : memref<8xf32, #tpu.memory_space<smem>>
    %c6_46 = arith.constant 6 : index
    %30 = memref.load %arg2[%c6_46] : memref<8xf32, #tpu.memory_space<smem>>
    %c7_47 = arith.constant 7 : index
    %31 = memref.load %arg2[%c7_47] : memref<8xf32, #tpu.memory_space<smem>>
    %c0_48 = arith.constant 0 : index
    %c0_49 = arith.constant 0 : index
    %32 = memref.load %arg3[%c0_48, %c0_49] : memref<8x8xf32, #tpu.memory_space<smem>>
    %c0_50 = arith.constant 0 : index
    %c1_51 = arith.constant 1 : index
    %33 = memref.load %arg3[%c0_50, %c1_51] : memref<8x8xf32, #tpu.memory_space<smem>>
    %c0_52 = arith.constant 0 : index
    %c2_53 = arith.constant 2 : index
    %34 = memref.load %arg3[%c0_52, %c2_53] : memref<8x8xf32, #tpu.memory_space<smem>>
    %c0_54 = arith.constant 0 : index
    %c3_55 = arith.constant 3 : index
    %35 = memref.load %arg3[%c0_54, %c3_55] : memref<8x8xf32, #tpu.memory_space<smem>>
    %c0_56 = arith.constant 0 : index
    %c4_57 = arith.constant 4 : index
    %36 = memref.load %arg3[%c0_56, %c4_57] : memref<8x8xf32, #tpu.memory_space<smem>>
    %c0_58 = arith.constant 0 : index
    %c5_59 = arith.constant 5 : index
    %37 = memref.load %arg3[%c0_58, %c5_59] : memref<8x8xf32, #tpu.memory_space<smem>>
    %c0_60 = arith.constant 0 : index
    %c6_61 = arith.constant 6 : index
    %38 = memref.load %arg3[%c0_60, %c6_61] : memref<8x8xf32, #tpu.memory_space<smem>>
    %c0_62 = arith.constant 0 : index
    %c7_63 = arith.constant 7 : index
    %39 = memref.load %arg3[%c0_62, %c7_63] : memref<8x8xf32, #tpu.memory_space<smem>>
    %c1_64 = arith.constant 1 : index
    %c0_65 = arith.constant 0 : index
    %40 = memref.load %arg3[%c1_64, %c0_65] : memref<8x8xf32, #tpu.memory_space<smem>>
    %c1_66 = arith.constant 1 : index
    %c1_67 = arith.constant 1 : index
    %41 = memref.load %arg3[%c1_66, %c1_67] : memref<8x8xf32, #tpu.memory_space<smem>>
    %c1_68 = arith.constant 1 : index
    %c2_69 = arith.constant 2 : index
    %42 = memref.load %arg3[%c1_68, %c2_69] : memref<8x8xf32, #tpu.memory_space<smem>>
    %c1_70 = arith.constant 1 : index
    %c3_71 = arith.constant 3 : index
    %43 = memref.load %arg3[%c1_70, %c3_71] : memref<8x8xf32, #tpu.memory_space<smem>>
    %c1_72 = arith.constant 1 : index
    %c4_73 = arith.constant 4 : index
    %44 = memref.load %arg3[%c1_72, %c4_73] : memref<8x8xf32, #tpu.memory_space<smem>>
    %c1_74 = arith.constant 1 : index
    %c5_75 = arith.constant 5 : index
    %45 = memref.load %arg3[%c1_74, %c5_75] : memref<8x8xf32, #tpu.memory_space<smem>>
    %c1_76 = arith.constant 1 : index
    %c6_77 = arith.constant 6 : index
    %46 = memref.load %arg3[%c1_76, %c6_77] : memref<8x8xf32, #tpu.memory_space<smem>>
    %c1_78 = arith.constant 1 : index
    %c7_79 = arith.constant 7 : index
    %47 = memref.load %arg3[%c1_78, %c7_79] : memref<8x8xf32, #tpu.memory_space<smem>>
    %c2_80 = arith.constant 2 : index
    %c0_81 = arith.constant 0 : index
    %48 = memref.load %arg3[%c2_80, %c0_81] : memref<8x8xf32, #tpu.memory_space<smem>>
    %c2_82 = arith.constant 2 : index
    %c1_83 = arith.constant 1 : index
    %49 = memref.load %arg3[%c2_82, %c1_83] : memref<8x8xf32, #tpu.memory_space<smem>>
    %c2_84 = arith.constant 2 : index
    %c2_85 = arith.constant 2 : index
    %50 = memref.load %arg3[%c2_84, %c2_85] : memref<8x8xf32, #tpu.memory_space<smem>>
    %c2_86 = arith.constant 2 : index
    %c3_87 = arith.constant 3 : index
    %51 = memref.load %arg3[%c2_86, %c3_87] : memref<8x8xf32, #tpu.memory_space<smem>>
    %c2_88 = arith.constant 2 : index
    %c4_89 = arith.constant 4 : index
    %52 = memref.load %arg3[%c2_88, %c4_89] : memref<8x8xf32, #tpu.memory_space<smem>>
    %c2_90 = arith.constant 2 : index
    %c5_91 = arith.constant 5 : index
    %53 = memref.load %arg3[%c2_90, %c5_91] : memref<8x8xf32, #tpu.memory_space<smem>>
    %c2_92 = arith.constant 2 : index
    %c6_93 = arith.constant 6 : index
    %54 = memref.load %arg3[%c2_92, %c6_93] : memref<8x8xf32, #tpu.memory_space<smem>>
    %c2_94 = arith.constant 2 : index
    %c7_95 = arith.constant 7 : index
    %55 = memref.load %arg3[%c2_94, %c7_95] : memref<8x8xf32, #tpu.memory_space<smem>>
    %c3_96 = arith.constant 3 : index
    %c0_97 = arith.constant 0 : index
    %56 = memref.load %arg3[%c3_96, %c0_97] : memref<8x8xf32, #tpu.memory_space<smem>>
    %c3_98 = arith.constant 3 : index
    %c1_99 = arith.constant 1 : index
    %57 = memref.load %arg3[%c3_98, %c1_99] : memref<8x8xf32, #tpu.memory_space<smem>>
    %c3_100 = arith.constant 3 : index
    %c2_101 = arith.constant 2 : index
    %58 = memref.load %arg3[%c3_100, %c2_101] : memref<8x8xf32, #tpu.memory_space<smem>>
    %c3_102 = arith.constant 3 : index
    %c3_103 = arith.constant 3 : index
    %59 = memref.load %arg3[%c3_102, %c3_103] : memref<8x8xf32, #tpu.memory_space<smem>>
    %c3_104 = arith.constant 3 : index
    %c4_105 = arith.constant 4 : index
    %60 = memref.load %arg3[%c3_104, %c4_105] : memref<8x8xf32, #tpu.memory_space<smem>>
    %c3_106 = arith.constant 3 : index
    %c5_107 = arith.constant 5 : index
    %61 = memref.load %arg3[%c3_106, %c5_107] : memref<8x8xf32, #tpu.memory_space<smem>>
    %c3_108 = arith.constant 3 : index
    %c6_109 = arith.constant 6 : index
    %62 = memref.load %arg3[%c3_108, %c6_109] : memref<8x8xf32, #tpu.memory_space<smem>>
    %c3_110 = arith.constant 3 : index
    %c7_111 = arith.constant 7 : index
    %63 = memref.load %arg3[%c3_110, %c7_111] : memref<8x8xf32, #tpu.memory_space<smem>>
    %c4_112 = arith.constant 4 : index
    %c0_113 = arith.constant 0 : index
    %64 = memref.load %arg3[%c4_112, %c0_113] : memref<8x8xf32, #tpu.memory_space<smem>>
    %c4_114 = arith.constant 4 : index
    %c1_115 = arith.constant 1 : index
    %65 = memref.load %arg3[%c4_114, %c1_115] : memref<8x8xf32, #tpu.memory_space<smem>>
    %c4_116 = arith.constant 4 : index
    %c2_117 = arith.constant 2 : index
    %66 = memref.load %arg3[%c4_116, %c2_117] : memref<8x8xf32, #tpu.memory_space<smem>>
    %c4_118 = arith.constant 4 : index
    %c3_119 = arith.constant 3 : index
    %67 = memref.load %arg3[%c4_118, %c3_119] : memref<8x8xf32, #tpu.memory_space<smem>>
    %c4_120 = arith.constant 4 : index
    %c4_121 = arith.constant 4 : index
    %68 = memref.load %arg3[%c4_120, %c4_121] : memref<8x8xf32, #tpu.memory_space<smem>>
    %c4_122 = arith.constant 4 : index
    %c5_123 = arith.constant 5 : index
    %69 = memref.load %arg3[%c4_122, %c5_123] : memref<8x8xf32, #tpu.memory_space<smem>>
    %c4_124 = arith.constant 4 : index
    %c6_125 = arith.constant 6 : index
    %70 = memref.load %arg3[%c4_124, %c6_125] : memref<8x8xf32, #tpu.memory_space<smem>>
    %c4_126 = arith.constant 4 : index
    %c7_127 = arith.constant 7 : index
    %71 = memref.load %arg3[%c4_126, %c7_127] : memref<8x8xf32, #tpu.memory_space<smem>>
    %c5_128 = arith.constant 5 : index
    %c0_129 = arith.constant 0 : index
    %72 = memref.load %arg3[%c5_128, %c0_129] : memref<8x8xf32, #tpu.memory_space<smem>>
    %c5_130 = arith.constant 5 : index
    %c1_131 = arith.constant 1 : index
    %73 = memref.load %arg3[%c5_130, %c1_131] : memref<8x8xf32, #tpu.memory_space<smem>>
    %c5_132 = arith.constant 5 : index
    %c2_133 = arith.constant 2 : index
    %74 = memref.load %arg3[%c5_132, %c2_133] : memref<8x8xf32, #tpu.memory_space<smem>>
    %c5_134 = arith.constant 5 : index
    %c3_135 = arith.constant 3 : index
    %75 = memref.load %arg3[%c5_134, %c3_135] : memref<8x8xf32, #tpu.memory_space<smem>>
    %c5_136 = arith.constant 5 : index
    %c4_137 = arith.constant 4 : index
    %76 = memref.load %arg3[%c5_136, %c4_137] : memref<8x8xf32, #tpu.memory_space<smem>>
    %c5_138 = arith.constant 5 : index
    %c5_139 = arith.constant 5 : index
    %77 = memref.load %arg3[%c5_138, %c5_139] : memref<8x8xf32, #tpu.memory_space<smem>>
    %c5_140 = arith.constant 5 : index
    %c6_141 = arith.constant 6 : index
    %78 = memref.load %arg3[%c5_140, %c6_141] : memref<8x8xf32, #tpu.memory_space<smem>>
    %c5_142 = arith.constant 5 : index
    %c7_143 = arith.constant 7 : index
    %79 = memref.load %arg3[%c5_142, %c7_143] : memref<8x8xf32, #tpu.memory_space<smem>>
    %c6_144 = arith.constant 6 : index
    %c0_145 = arith.constant 0 : index
    %80 = memref.load %arg3[%c6_144, %c0_145] : memref<8x8xf32, #tpu.memory_space<smem>>
    %c6_146 = arith.constant 6 : index
    %c1_147 = arith.constant 1 : index
    %81 = memref.load %arg3[%c6_146, %c1_147] : memref<8x8xf32, #tpu.memory_space<smem>>
    %c6_148 = arith.constant 6 : index
    %c2_149 = arith.constant 2 : index
    %82 = memref.load %arg3[%c6_148, %c2_149] : memref<8x8xf32, #tpu.memory_space<smem>>
    %c6_150 = arith.constant 6 : index
    %c3_151 = arith.constant 3 : index
    %83 = memref.load %arg3[%c6_150, %c3_151] : memref<8x8xf32, #tpu.memory_space<smem>>
    %c6_152 = arith.constant 6 : index
    %c4_153 = arith.constant 4 : index
    %84 = memref.load %arg3[%c6_152, %c4_153] : memref<8x8xf32, #tpu.memory_space<smem>>
    %c6_154 = arith.constant 6 : index
    %c5_155 = arith.constant 5 : index
    %85 = memref.load %arg3[%c6_154, %c5_155] : memref<8x8xf32, #tpu.memory_space<smem>>
    %c6_156 = arith.constant 6 : index
    %c6_157 = arith.constant 6 : index
    %86 = memref.load %arg3[%c6_156, %c6_157] : memref<8x8xf32, #tpu.memory_space<smem>>
    %c6_158 = arith.constant 6 : index
    %c7_159 = arith.constant 7 : index
    %87 = memref.load %arg3[%c6_158, %c7_159] : memref<8x8xf32, #tpu.memory_space<smem>>
    %c7_160 = arith.constant 7 : index
    %c0_161 = arith.constant 0 : index
    %88 = memref.load %arg3[%c7_160, %c0_161] : memref<8x8xf32, #tpu.memory_space<smem>>
    %c7_162 = arith.constant 7 : index
    %c1_163 = arith.constant 1 : index
    %89 = memref.load %arg3[%c7_162, %c1_163] : memref<8x8xf32, #tpu.memory_space<smem>>
    %c7_164 = arith.constant 7 : index
    %c2_165 = arith.constant 2 : index
    %90 = memref.load %arg3[%c7_164, %c2_165] : memref<8x8xf32, #tpu.memory_space<smem>>
    %c7_166 = arith.constant 7 : index
    %c3_167 = arith.constant 3 : index
    %91 = memref.load %arg3[%c7_166, %c3_167] : memref<8x8xf32, #tpu.memory_space<smem>>
    %c7_168 = arith.constant 7 : index
    %c4_169 = arith.constant 4 : index
    %92 = memref.load %arg3[%c7_168, %c4_169] : memref<8x8xf32, #tpu.memory_space<smem>>
    %c7_170 = arith.constant 7 : index
    %c5_171 = arith.constant 5 : index
    %93 = memref.load %arg3[%c7_170, %c5_171] : memref<8x8xf32, #tpu.memory_space<smem>>
    %c7_172 = arith.constant 7 : index
    %c6_173 = arith.constant 6 : index
    %94 = memref.load %arg3[%c7_172, %c6_173] : memref<8x8xf32, #tpu.memory_space<smem>>
    %c7_174 = arith.constant 7 : index
    %c7_175 = arith.constant 7 : index
    %95 = memref.load %arg3[%c7_174, %c7_175] : memref<8x8xf32, #tpu.memory_space<smem>>
    %c0_176 = arith.constant 0 : index
    %96 = memref.load %arg4[%c0_176] : memref<8xf32, #tpu.memory_space<smem>>
    %c1_177 = arith.constant 1 : index
    %97 = memref.load %arg4[%c1_177] : memref<8xf32, #tpu.memory_space<smem>>
    %c2_178 = arith.constant 2 : index
    %98 = memref.load %arg4[%c2_178] : memref<8xf32, #tpu.memory_space<smem>>
    %c3_179 = arith.constant 3 : index
    %99 = memref.load %arg4[%c3_179] : memref<8xf32, #tpu.memory_space<smem>>
    %c4_180 = arith.constant 4 : index
    %100 = memref.load %arg4[%c4_180] : memref<8xf32, #tpu.memory_space<smem>>
    %c5_181 = arith.constant 5 : index
    %101 = memref.load %arg4[%c5_181] : memref<8xf32, #tpu.memory_space<smem>>
    %c6_182 = arith.constant 6 : index
    %102 = memref.load %arg4[%c6_182] : memref<8xf32, #tpu.memory_space<smem>>
    %c7_183 = arith.constant 7 : index
    %103 = memref.load %arg4[%c7_183] : memref<8xf32, #tpu.memory_space<smem>>
    %c0_184 = arith.constant 0 : index
    %c0_185 = arith.constant 0 : index
    %104 = memref.load %arg5[%c0_184, %c0_185] : memref<3x8xf32, #tpu.memory_space<smem>>
    %c0_186 = arith.constant 0 : index
    %c1_187 = arith.constant 1 : index
    %105 = memref.load %arg5[%c0_186, %c1_187] : memref<3x8xf32, #tpu.memory_space<smem>>
    %c0_188 = arith.constant 0 : index
    %c2_189 = arith.constant 2 : index
    %106 = memref.load %arg5[%c0_188, %c2_189] : memref<3x8xf32, #tpu.memory_space<smem>>
    %c0_190 = arith.constant 0 : index
    %c3_191 = arith.constant 3 : index
    %107 = memref.load %arg5[%c0_190, %c3_191] : memref<3x8xf32, #tpu.memory_space<smem>>
    %c0_192 = arith.constant 0 : index
    %c4_193 = arith.constant 4 : index
    %108 = memref.load %arg5[%c0_192, %c4_193] : memref<3x8xf32, #tpu.memory_space<smem>>
    %c0_194 = arith.constant 0 : index
    %c5_195 = arith.constant 5 : index
    %109 = memref.load %arg5[%c0_194, %c5_195] : memref<3x8xf32, #tpu.memory_space<smem>>
    %c0_196 = arith.constant 0 : index
    %c6_197 = arith.constant 6 : index
    %110 = memref.load %arg5[%c0_196, %c6_197] : memref<3x8xf32, #tpu.memory_space<smem>>
    %c0_198 = arith.constant 0 : index
    %c7_199 = arith.constant 7 : index
    %111 = memref.load %arg5[%c0_198, %c7_199] : memref<3x8xf32, #tpu.memory_space<smem>>
    %c1_200 = arith.constant 1 : index
    %c0_201 = arith.constant 0 : index
    %112 = memref.load %arg5[%c1_200, %c0_201] : memref<3x8xf32, #tpu.memory_space<smem>>
    %c1_202 = arith.constant 1 : index
    %c1_203 = arith.constant 1 : index
    %113 = memref.load %arg5[%c1_202, %c1_203] : memref<3x8xf32, #tpu.memory_space<smem>>
    %c1_204 = arith.constant 1 : index
    %c2_205 = arith.constant 2 : index
    %114 = memref.load %arg5[%c1_204, %c2_205] : memref<3x8xf32, #tpu.memory_space<smem>>
    %c1_206 = arith.constant 1 : index
    %c3_207 = arith.constant 3 : index
    %115 = memref.load %arg5[%c1_206, %c3_207] : memref<3x8xf32, #tpu.memory_space<smem>>
    %c1_208 = arith.constant 1 : index
    %c4_209 = arith.constant 4 : index
    %116 = memref.load %arg5[%c1_208, %c4_209] : memref<3x8xf32, #tpu.memory_space<smem>>
    %c1_210 = arith.constant 1 : index
    %c5_211 = arith.constant 5 : index
    %117 = memref.load %arg5[%c1_210, %c5_211] : memref<3x8xf32, #tpu.memory_space<smem>>
    %c1_212 = arith.constant 1 : index
    %c6_213 = arith.constant 6 : index
    %118 = memref.load %arg5[%c1_212, %c6_213] : memref<3x8xf32, #tpu.memory_space<smem>>
    %c1_214 = arith.constant 1 : index
    %c7_215 = arith.constant 7 : index
    %119 = memref.load %arg5[%c1_214, %c7_215] : memref<3x8xf32, #tpu.memory_space<smem>>
    %c2_216 = arith.constant 2 : index
    %c0_217 = arith.constant 0 : index
    %120 = memref.load %arg5[%c2_216, %c0_217] : memref<3x8xf32, #tpu.memory_space<smem>>
    %c2_218 = arith.constant 2 : index
    %c1_219 = arith.constant 1 : index
    %121 = memref.load %arg5[%c2_218, %c1_219] : memref<3x8xf32, #tpu.memory_space<smem>>
    %c2_220 = arith.constant 2 : index
    %c2_221 = arith.constant 2 : index
    %122 = memref.load %arg5[%c2_220, %c2_221] : memref<3x8xf32, #tpu.memory_space<smem>>
    %c2_222 = arith.constant 2 : index
    %c3_223 = arith.constant 3 : index
    %123 = memref.load %arg5[%c2_222, %c3_223] : memref<3x8xf32, #tpu.memory_space<smem>>
    %c2_224 = arith.constant 2 : index
    %c4_225 = arith.constant 4 : index
    %124 = memref.load %arg5[%c2_224, %c4_225] : memref<3x8xf32, #tpu.memory_space<smem>>
    %c2_226 = arith.constant 2 : index
    %c5_227 = arith.constant 5 : index
    %125 = memref.load %arg5[%c2_226, %c5_227] : memref<3x8xf32, #tpu.memory_space<smem>>
    %c2_228 = arith.constant 2 : index
    %c6_229 = arith.constant 6 : index
    %126 = memref.load %arg5[%c2_228, %c6_229] : memref<3x8xf32, #tpu.memory_space<smem>>
    %c2_230 = arith.constant 2 : index
    %c7_231 = arith.constant 7 : index
    %127 = memref.load %arg5[%c2_230, %c7_231] : memref<3x8xf32, #tpu.memory_space<smem>>
    %c0_232 = arith.constant 0 : index
    %128 = memref.load %arg6[%c0_232] : memref<3xf32, #tpu.memory_space<smem>>
    %c1_233 = arith.constant 1 : index
    %129 = memref.load %arg6[%c1_233] : memref<3xf32, #tpu.memory_space<smem>>
    %c2_234 = arith.constant 2 : index
    %130 = memref.load %arg6[%c2_234] : memref<3xf32, #tpu.memory_space<smem>>
    %c0_i32 = arith.constant 0 : i32
    %c1_i32 = arith.constant 1 : i32
    %131 = arith.muli %c0_i32, %c1_i32 : i32
    %c0_i32_235 = arith.constant 0 : i32
    %132 = arith.addi %c0_i32_235, %131 : i32
    %c1_i32_236 = arith.constant 1 : i32
    %133 = arith.muli %132, %c1_i32_236 : i32
    %134 = tpu.assume_multiple %133, 1 : i32
    %c0_237 = arith.constant 0 : index
    %135 = arith.index_cast %134 : i32 to index
    %c0_238 = arith.constant 0 : index
    %136 = vector.load %arg7[%c0_237, %135, %c0_238] : memref<3x1x128xf32, #tpu.memory_space<vmem>>, vector<1x1x128xf32>
    %137 = vector.shape_cast %136 : vector<1x1x128xf32> to vector<1x128xf32>
    %c1_239 = arith.constant 1 : index
    %138 = arith.index_cast %134 : i32 to index
    %c0_240 = arith.constant 0 : index
    %139 = vector.load %arg7[%c1_239, %138, %c0_240] : memref<3x1x128xf32, #tpu.memory_space<vmem>>, vector<1x1x128xf32>
    %140 = vector.shape_cast %139 : vector<1x1x128xf32> to vector<1x128xf32>
    %c2_241 = arith.constant 2 : index
    %141 = arith.index_cast %134 : i32 to index
    %c0_242 = arith.constant 0 : index
    %142 = vector.load %arg7[%c2_241, %141, %c0_242] : memref<3x1x128xf32, #tpu.memory_space<vmem>>, vector<1x1x128xf32>
    %143 = vector.shape_cast %142 : vector<1x1x128xf32> to vector<1x128xf32>
    %144 = vector.broadcast %0 : f32 to vector<1x128xf32>
    %145 = arith.mulf %137, %144 : vector<1x128xf32>
    %146 = vector.broadcast %1 : f32 to vector<1x128xf32>
    %147 = arith.mulf %140, %146 : vector<1x128xf32>
    %148 = arith.addf %145, %147 : vector<1x128xf32>
    %149 = vector.broadcast %2 : f32 to vector<1x128xf32>
    %150 = arith.mulf %143, %149 : vector<1x128xf32>
    %151 = arith.addf %148, %150 : vector<1x128xf32>
    %152 = vector.broadcast %24 : f32 to vector<1x128xf32>
    %153 = arith.addf %151, %152 : vector<1x128xf32>
    %cst = arith.constant 0.000000e+00 : f32
    %154 = vector.broadcast %cst : f32 to vector<1x128xf32>
    %155 = arith.maximumf %153, %154 : vector<1x128xf32>
    %156 = vector.broadcast %3 : f32 to vector<1x128xf32>
    %157 = arith.mulf %137, %156 : vector<1x128xf32>
    %158 = vector.broadcast %4 : f32 to vector<1x128xf32>
    %159 = arith.mulf %140, %158 : vector<1x128xf32>
    %160 = arith.addf %157, %159 : vector<1x128xf32>
    %161 = vector.broadcast %5 : f32 to vector<1x128xf32>
    %162 = arith.mulf %143, %161 : vector<1x128xf32>
    %163 = arith.addf %160, %162 : vector<1x128xf32>
    %164 = vector.broadcast %25 : f32 to vector<1x128xf32>
    %165 = arith.addf %163, %164 : vector<1x128xf32>
    %cst_243 = arith.constant 0.000000e+00 : f32
    %166 = vector.broadcast %cst_243 : f32 to vector<1x128xf32>
    %167 = arith.maximumf %165, %166 : vector<1x128xf32>
    %168 = vector.broadcast %6 : f32 to vector<1x128xf32>
    %169 = arith.mulf %137, %168 : vector<1x128xf32>
    %170 = vector.broadcast %7 : f32 to vector<1x128xf32>
    %171 = arith.mulf %140, %170 : vector<1x128xf32>
    %172 = arith.addf %169, %171 : vector<1x128xf32>
    %173 = vector.broadcast %8 : f32 to vector<1x128xf32>
    %174 = arith.mulf %143, %173 : vector<1x128xf32>
    %175 = arith.addf %172, %174 : vector<1x128xf32>
    %176 = vector.broadcast %26 : f32 to vector<1x128xf32>
    %177 = arith.addf %175, %176 : vector<1x128xf32>
    %cst_244 = arith.constant 0.000000e+00 : f32
    %178 = vector.broadcast %cst_244 : f32 to vector<1x128xf32>
    %179 = arith.maximumf %177, %178 : vector<1x128xf32>
    %180 = vector.broadcast %9 : f32 to vector<1x128xf32>
    %181 = arith.mulf %137, %180 : vector<1x128xf32>
    %182 = vector.broadcast %10 : f32 to vector<1x128xf32>
    %183 = arith.mulf %140, %182 : vector<1x128xf32>
    %184 = arith.addf %181, %183 : vector<1x128xf32>
    %185 = vector.broadcast %11 : f32 to vector<1x128xf32>
    %186 = arith.mulf %143, %185 : vector<1x128xf32>
    %187 = arith.addf %184, %186 : vector<1x128xf32>
    %188 = vector.broadcast %27 : f32 to vector<1x128xf32>
    %189 = arith.addf %187, %188 : vector<1x128xf32>
    %cst_245 = arith.constant 0.000000e+00 : f32
    %190 = vector.broadcast %cst_245 : f32 to vector<1x128xf32>
    %191 = arith.maximumf %189, %190 : vector<1x128xf32>
    %192 = vector.broadcast %12 : f32 to vector<1x128xf32>
    %193 = arith.mulf %137, %192 : vector<1x128xf32>
    %194 = vector.broadcast %13 : f32 to vector<1x128xf32>
    %195 = arith.mulf %140, %194 : vector<1x128xf32>
    %196 = arith.addf %193, %195 : vector<1x128xf32>
    %197 = vector.broadcast %14 : f32 to vector<1x128xf32>
    %198 = arith.mulf %143, %197 : vector<1x128xf32>
    %199 = arith.addf %196, %198 : vector<1x128xf32>
    %200 = vector.broadcast %28 : f32 to vector<1x128xf32>
    %201 = arith.addf %199, %200 : vector<1x128xf32>
    %cst_246 = arith.constant 0.000000e+00 : f32
    %202 = vector.broadcast %cst_246 : f32 to vector<1x128xf32>
    %203 = arith.maximumf %201, %202 : vector<1x128xf32>
    %204 = vector.broadcast %15 : f32 to vector<1x128xf32>
    %205 = arith.mulf %137, %204 : vector<1x128xf32>
    %206 = vector.broadcast %16 : f32 to vector<1x128xf32>
    %207 = arith.mulf %140, %206 : vector<1x128xf32>
    %208 = arith.addf %205, %207 : vector<1x128xf32>
    %209 = vector.broadcast %17 : f32 to vector<1x128xf32>
    %210 = arith.mulf %143, %209 : vector<1x128xf32>
    %211 = arith.addf %208, %210 : vector<1x128xf32>
    %212 = vector.broadcast %29 : f32 to vector<1x128xf32>
    %213 = arith.addf %211, %212 : vector<1x128xf32>
    %cst_247 = arith.constant 0.000000e+00 : f32
    %214 = vector.broadcast %cst_247 : f32 to vector<1x128xf32>
    %215 = arith.maximumf %213, %214 : vector<1x128xf32>
    %216 = vector.broadcast %18 : f32 to vector<1x128xf32>
    %217 = arith.mulf %137, %216 : vector<1x128xf32>
    %218 = vector.broadcast %19 : f32 to vector<1x128xf32>
    %219 = arith.mulf %140, %218 : vector<1x128xf32>
    %220 = arith.addf %217, %219 : vector<1x128xf32>
    %221 = vector.broadcast %20 : f32 to vector<1x128xf32>
    %222 = arith.mulf %143, %221 : vector<1x128xf32>
    %223 = arith.addf %220, %222 : vector<1x128xf32>
    %224 = vector.broadcast %30 : f32 to vector<1x128xf32>
    %225 = arith.addf %223, %224 : vector<1x128xf32>
    %cst_248 = arith.constant 0.000000e+00 : f32
    %226 = vector.broadcast %cst_248 : f32 to vector<1x128xf32>
    %227 = arith.maximumf %225, %226 : vector<1x128xf32>
    %228 = vector.broadcast %21 : f32 to vector<1x128xf32>
    %229 = arith.mulf %137, %228 : vector<1x128xf32>
    %230 = vector.broadcast %22 : f32 to vector<1x128xf32>
    %231 = arith.mulf %140, %230 : vector<1x128xf32>
    %232 = arith.addf %229, %231 : vector<1x128xf32>
    %233 = vector.broadcast %23 : f32 to vector<1x128xf32>
    %234 = arith.mulf %143, %233 : vector<1x128xf32>
    %235 = arith.addf %232, %234 : vector<1x128xf32>
    %236 = vector.broadcast %31 : f32 to vector<1x128xf32>
    %237 = arith.addf %235, %236 : vector<1x128xf32>
    %cst_249 = arith.constant 0.000000e+00 : f32
    %238 = vector.broadcast %cst_249 : f32 to vector<1x128xf32>
    %239 = arith.maximumf %237, %238 : vector<1x128xf32>
    %240 = vector.broadcast %32 : f32 to vector<1x128xf32>
    %241 = arith.mulf %155, %240 : vector<1x128xf32>
    %242 = vector.broadcast %33 : f32 to vector<1x128xf32>
    %243 = arith.mulf %167, %242 : vector<1x128xf32>
    %244 = arith.addf %241, %243 : vector<1x128xf32>
    %245 = vector.broadcast %34 : f32 to vector<1x128xf32>
    %246 = arith.mulf %179, %245 : vector<1x128xf32>
    %247 = arith.addf %244, %246 : vector<1x128xf32>
    %248 = vector.broadcast %35 : f32 to vector<1x128xf32>
    %249 = arith.mulf %191, %248 : vector<1x128xf32>
    %250 = arith.addf %247, %249 : vector<1x128xf32>
    %251 = vector.broadcast %36 : f32 to vector<1x128xf32>
    %252 = arith.mulf %203, %251 : vector<1x128xf32>
    %253 = arith.addf %250, %252 : vector<1x128xf32>
    %254 = vector.broadcast %37 : f32 to vector<1x128xf32>
    %255 = arith.mulf %215, %254 : vector<1x128xf32>
    %256 = arith.addf %253, %255 : vector<1x128xf32>
    %257 = vector.broadcast %38 : f32 to vector<1x128xf32>
    %258 = arith.mulf %227, %257 : vector<1x128xf32>
    %259 = arith.addf %256, %258 : vector<1x128xf32>
    %260 = vector.broadcast %39 : f32 to vector<1x128xf32>
    %261 = arith.mulf %239, %260 : vector<1x128xf32>
    %262 = arith.addf %259, %261 : vector<1x128xf32>
    %263 = vector.broadcast %96 : f32 to vector<1x128xf32>
    %264 = arith.addf %262, %263 : vector<1x128xf32>
    %cst_250 = arith.constant 0.000000e+00 : f32
    %265 = vector.broadcast %cst_250 : f32 to vector<1x128xf32>
    %266 = arith.maximumf %264, %265 : vector<1x128xf32>
    %267 = vector.broadcast %40 : f32 to vector<1x128xf32>
    %268 = arith.mulf %155, %267 : vector<1x128xf32>
    %269 = vector.broadcast %41 : f32 to vector<1x128xf32>
    %270 = arith.mulf %167, %269 : vector<1x128xf32>
    %271 = arith.addf %268, %270 : vector<1x128xf32>
    %272 = vector.broadcast %42 : f32 to vector<1x128xf32>
    %273 = arith.mulf %179, %272 : vector<1x128xf32>
    %274 = arith.addf %271, %273 : vector<1x128xf32>
    %275 = vector.broadcast %43 : f32 to vector<1x128xf32>
    %276 = arith.mulf %191, %275 : vector<1x128xf32>
    %277 = arith.addf %274, %276 : vector<1x128xf32>
    %278 = vector.broadcast %44 : f32 to vector<1x128xf32>
    %279 = arith.mulf %203, %278 : vector<1x128xf32>
    %280 = arith.addf %277, %279 : vector<1x128xf32>
    %281 = vector.broadcast %45 : f32 to vector<1x128xf32>
    %282 = arith.mulf %215, %281 : vector<1x128xf32>
    %283 = arith.addf %280, %282 : vector<1x128xf32>
    %284 = vector.broadcast %46 : f32 to vector<1x128xf32>
    %285 = arith.mulf %227, %284 : vector<1x128xf32>
    %286 = arith.addf %283, %285 : vector<1x128xf32>
    %287 = vector.broadcast %47 : f32 to vector<1x128xf32>
    %288 = arith.mulf %239, %287 : vector<1x128xf32>
    %289 = arith.addf %286, %288 : vector<1x128xf32>
    %290 = vector.broadcast %97 : f32 to vector<1x128xf32>
    %291 = arith.addf %289, %290 : vector<1x128xf32>
    %cst_251 = arith.constant 0.000000e+00 : f32
    %292 = vector.broadcast %cst_251 : f32 to vector<1x128xf32>
    %293 = arith.maximumf %291, %292 : vector<1x128xf32>
    %294 = vector.broadcast %48 : f32 to vector<1x128xf32>
    %295 = arith.mulf %155, %294 : vector<1x128xf32>
    %296 = vector.broadcast %49 : f32 to vector<1x128xf32>
    %297 = arith.mulf %167, %296 : vector<1x128xf32>
    %298 = arith.addf %295, %297 : vector<1x128xf32>
    %299 = vector.broadcast %50 : f32 to vector<1x128xf32>
    %300 = arith.mulf %179, %299 : vector<1x128xf32>
    %301 = arith.addf %298, %300 : vector<1x128xf32>
    %302 = vector.broadcast %51 : f32 to vector<1x128xf32>
    %303 = arith.mulf %191, %302 : vector<1x128xf32>
    %304 = arith.addf %301, %303 : vector<1x128xf32>
    %305 = vector.broadcast %52 : f32 to vector<1x128xf32>
    %306 = arith.mulf %203, %305 : vector<1x128xf32>
    %307 = arith.addf %304, %306 : vector<1x128xf32>
    %308 = vector.broadcast %53 : f32 to vector<1x128xf32>
    %309 = arith.mulf %215, %308 : vector<1x128xf32>
    %310 = arith.addf %307, %309 : vector<1x128xf32>
    %311 = vector.broadcast %54 : f32 to vector<1x128xf32>
    %312 = arith.mulf %227, %311 : vector<1x128xf32>
    %313 = arith.addf %310, %312 : vector<1x128xf32>
    %314 = vector.broadcast %55 : f32 to vector<1x128xf32>
    %315 = arith.mulf %239, %314 : vector<1x128xf32>
    %316 = arith.addf %313, %315 : vector<1x128xf32>
    %317 = vector.broadcast %98 : f32 to vector<1x128xf32>
    %318 = arith.addf %316, %317 : vector<1x128xf32>
    %cst_252 = arith.constant 0.000000e+00 : f32
    %319 = vector.broadcast %cst_252 : f32 to vector<1x128xf32>
    %320 = arith.maximumf %318, %319 : vector<1x128xf32>
    %321 = vector.broadcast %56 : f32 to vector<1x128xf32>
    %322 = arith.mulf %155, %321 : vector<1x128xf32>
    %323 = vector.broadcast %57 : f32 to vector<1x128xf32>
    %324 = arith.mulf %167, %323 : vector<1x128xf32>
    %325 = arith.addf %322, %324 : vector<1x128xf32>
    %326 = vector.broadcast %58 : f32 to vector<1x128xf32>
    %327 = arith.mulf %179, %326 : vector<1x128xf32>
    %328 = arith.addf %325, %327 : vector<1x128xf32>
    %329 = vector.broadcast %59 : f32 to vector<1x128xf32>
    %330 = arith.mulf %191, %329 : vector<1x128xf32>
    %331 = arith.addf %328, %330 : vector<1x128xf32>
    %332 = vector.broadcast %60 : f32 to vector<1x128xf32>
    %333 = arith.mulf %203, %332 : vector<1x128xf32>
    %334 = arith.addf %331, %333 : vector<1x128xf32>
    %335 = vector.broadcast %61 : f32 to vector<1x128xf32>
    %336 = arith.mulf %215, %335 : vector<1x128xf32>
    %337 = arith.addf %334, %336 : vector<1x128xf32>
    %338 = vector.broadcast %62 : f32 to vector<1x128xf32>
    %339 = arith.mulf %227, %338 : vector<1x128xf32>
    %340 = arith.addf %337, %339 : vector<1x128xf32>
    %341 = vector.broadcast %63 : f32 to vector<1x128xf32>
    %342 = arith.mulf %239, %341 : vector<1x128xf32>
    %343 = arith.addf %340, %342 : vector<1x128xf32>
    %344 = vector.broadcast %99 : f32 to vector<1x128xf32>
    %345 = arith.addf %343, %344 : vector<1x128xf32>
    %cst_253 = arith.constant 0.000000e+00 : f32
    %346 = vector.broadcast %cst_253 : f32 to vector<1x128xf32>
    %347 = arith.maximumf %345, %346 : vector<1x128xf32>
    %348 = vector.broadcast %64 : f32 to vector<1x128xf32>
    %349 = arith.mulf %155, %348 : vector<1x128xf32>
    %350 = vector.broadcast %65 : f32 to vector<1x128xf32>
    %351 = arith.mulf %167, %350 : vector<1x128xf32>
    %352 = arith.addf %349, %351 : vector<1x128xf32>
    %353 = vector.broadcast %66 : f32 to vector<1x128xf32>
    %354 = arith.mulf %179, %353 : vector<1x128xf32>
    %355 = arith.addf %352, %354 : vector<1x128xf32>
    %356 = vector.broadcast %67 : f32 to vector<1x128xf32>
    %357 = arith.mulf %191, %356 : vector<1x128xf32>
    %358 = arith.addf %355, %357 : vector<1x128xf32>
    %359 = vector.broadcast %68 : f32 to vector<1x128xf32>
    %360 = arith.mulf %203, %359 : vector<1x128xf32>
    %361 = arith.addf %358, %360 : vector<1x128xf32>
    %362 = vector.broadcast %69 : f32 to vector<1x128xf32>
    %363 = arith.mulf %215, %362 : vector<1x128xf32>
    %364 = arith.addf %361, %363 : vector<1x128xf32>
    %365 = vector.broadcast %70 : f32 to vector<1x128xf32>
    %366 = arith.mulf %227, %365 : vector<1x128xf32>
    %367 = arith.addf %364, %366 : vector<1x128xf32>
    %368 = vector.broadcast %71 : f32 to vector<1x128xf32>
    %369 = arith.mulf %239, %368 : vector<1x128xf32>
    %370 = arith.addf %367, %369 : vector<1x128xf32>
    %371 = vector.broadcast %100 : f32 to vector<1x128xf32>
    %372 = arith.addf %370, %371 : vector<1x128xf32>
    %cst_254 = arith.constant 0.000000e+00 : f32
    %373 = vector.broadcast %cst_254 : f32 to vector<1x128xf32>
    %374 = arith.maximumf %372, %373 : vector<1x128xf32>
    %375 = vector.broadcast %72 : f32 to vector<1x128xf32>
    %376 = arith.mulf %155, %375 : vector<1x128xf32>
    %377 = vector.broadcast %73 : f32 to vector<1x128xf32>
    %378 = arith.mulf %167, %377 : vector<1x128xf32>
    %379 = arith.addf %376, %378 : vector<1x128xf32>
    %380 = vector.broadcast %74 : f32 to vector<1x128xf32>
    %381 = arith.mulf %179, %380 : vector<1x128xf32>
    %382 = arith.addf %379, %381 : vector<1x128xf32>
    %383 = vector.broadcast %75 : f32 to vector<1x128xf32>
    %384 = arith.mulf %191, %383 : vector<1x128xf32>
    %385 = arith.addf %382, %384 : vector<1x128xf32>
    %386 = vector.broadcast %76 : f32 to vector<1x128xf32>
    %387 = arith.mulf %203, %386 : vector<1x128xf32>
    %388 = arith.addf %385, %387 : vector<1x128xf32>
    %389 = vector.broadcast %77 : f32 to vector<1x128xf32>
    %390 = arith.mulf %215, %389 : vector<1x128xf32>
    %391 = arith.addf %388, %390 : vector<1x128xf32>
    %392 = vector.broadcast %78 : f32 to vector<1x128xf32>
    %393 = arith.mulf %227, %392 : vector<1x128xf32>
    %394 = arith.addf %391, %393 : vector<1x128xf32>
    %395 = vector.broadcast %79 : f32 to vector<1x128xf32>
    %396 = arith.mulf %239, %395 : vector<1x128xf32>
    %397 = arith.addf %394, %396 : vector<1x128xf32>
    %398 = vector.broadcast %101 : f32 to vector<1x128xf32>
    %399 = arith.addf %397, %398 : vector<1x128xf32>
    %cst_255 = arith.constant 0.000000e+00 : f32
    %400 = vector.broadcast %cst_255 : f32 to vector<1x128xf32>
    %401 = arith.maximumf %399, %400 : vector<1x128xf32>
    %402 = vector.broadcast %80 : f32 to vector<1x128xf32>
    %403 = arith.mulf %155, %402 : vector<1x128xf32>
    %404 = vector.broadcast %81 : f32 to vector<1x128xf32>
    %405 = arith.mulf %167, %404 : vector<1x128xf32>
    %406 = arith.addf %403, %405 : vector<1x128xf32>
    %407 = vector.broadcast %82 : f32 to vector<1x128xf32>
    %408 = arith.mulf %179, %407 : vector<1x128xf32>
    %409 = arith.addf %406, %408 : vector<1x128xf32>
    %410 = vector.broadcast %83 : f32 to vector<1x128xf32>
    %411 = arith.mulf %191, %410 : vector<1x128xf32>
    %412 = arith.addf %409, %411 : vector<1x128xf32>
    %413 = vector.broadcast %84 : f32 to vector<1x128xf32>
    %414 = arith.mulf %203, %413 : vector<1x128xf32>
    %415 = arith.addf %412, %414 : vector<1x128xf32>
    %416 = vector.broadcast %85 : f32 to vector<1x128xf32>
    %417 = arith.mulf %215, %416 : vector<1x128xf32>
    %418 = arith.addf %415, %417 : vector<1x128xf32>
    %419 = vector.broadcast %86 : f32 to vector<1x128xf32>
    %420 = arith.mulf %227, %419 : vector<1x128xf32>
    %421 = arith.addf %418, %420 : vector<1x128xf32>
    %422 = vector.broadcast %87 : f32 to vector<1x128xf32>
    %423 = arith.mulf %239, %422 : vector<1x128xf32>
    %424 = arith.addf %421, %423 : vector<1x128xf32>
    %425 = vector.broadcast %102 : f32 to vector<1x128xf32>
    %426 = arith.addf %424, %425 : vector<1x128xf32>
    %cst_256 = arith.constant 0.000000e+00 : f32
    %427 = vector.broadcast %cst_256 : f32 to vector<1x128xf32>
    %428 = arith.maximumf %426, %427 : vector<1x128xf32>
    %429 = vector.broadcast %88 : f32 to vector<1x128xf32>
    %430 = arith.mulf %155, %429 : vector<1x128xf32>
    %431 = vector.broadcast %89 : f32 to vector<1x128xf32>
    %432 = arith.mulf %167, %431 : vector<1x128xf32>
    %433 = arith.addf %430, %432 : vector<1x128xf32>
    %434 = vector.broadcast %90 : f32 to vector<1x128xf32>
    %435 = arith.mulf %179, %434 : vector<1x128xf32>
    %436 = arith.addf %433, %435 : vector<1x128xf32>
    %437 = vector.broadcast %91 : f32 to vector<1x128xf32>
    %438 = arith.mulf %191, %437 : vector<1x128xf32>
    %439 = arith.addf %436, %438 : vector<1x128xf32>
    %440 = vector.broadcast %92 : f32 to vector<1x128xf32>
    %441 = arith.mulf %203, %440 : vector<1x128xf32>
    %442 = arith.addf %439, %441 : vector<1x128xf32>
    %443 = vector.broadcast %93 : f32 to vector<1x128xf32>
    %444 = arith.mulf %215, %443 : vector<1x128xf32>
    %445 = arith.addf %442, %444 : vector<1x128xf32>
    %446 = vector.broadcast %94 : f32 to vector<1x128xf32>
    %447 = arith.mulf %227, %446 : vector<1x128xf32>
    %448 = arith.addf %445, %447 : vector<1x128xf32>
    %449 = vector.broadcast %95 : f32 to vector<1x128xf32>
    %450 = arith.mulf %239, %449 : vector<1x128xf32>
    %451 = arith.addf %448, %450 : vector<1x128xf32>
    %452 = vector.broadcast %103 : f32 to vector<1x128xf32>
    %453 = arith.addf %451, %452 : vector<1x128xf32>
    %cst_257 = arith.constant 0.000000e+00 : f32
    %454 = vector.broadcast %cst_257 : f32 to vector<1x128xf32>
    %455 = arith.maximumf %453, %454 : vector<1x128xf32>
    %456 = vector.broadcast %104 : f32 to vector<1x128xf32>
    %457 = arith.mulf %266, %456 : vector<1x128xf32>
    %458 = vector.broadcast %105 : f32 to vector<1x128xf32>
    %459 = arith.mulf %293, %458 : vector<1x128xf32>
    %460 = arith.addf %457, %459 : vector<1x128xf32>
    %461 = vector.broadcast %106 : f32 to vector<1x128xf32>
    %462 = arith.mulf %320, %461 : vector<1x128xf32>
    %463 = arith.addf %460, %462 : vector<1x128xf32>
    %464 = vector.broadcast %107 : f32 to vector<1x128xf32>
    %465 = arith.mulf %347, %464 : vector<1x128xf32>
    %466 = arith.addf %463, %465 : vector<1x128xf32>
    %467 = vector.broadcast %108 : f32 to vector<1x128xf32>
    %468 = arith.mulf %374, %467 : vector<1x128xf32>
    %469 = arith.addf %466, %468 : vector<1x128xf32>
    %470 = vector.broadcast %109 : f32 to vector<1x128xf32>
    %471 = arith.mulf %401, %470 : vector<1x128xf32>
    %472 = arith.addf %469, %471 : vector<1x128xf32>
    %473 = vector.broadcast %110 : f32 to vector<1x128xf32>
    %474 = arith.mulf %428, %473 : vector<1x128xf32>
    %475 = arith.addf %472, %474 : vector<1x128xf32>
    %476 = vector.broadcast %111 : f32 to vector<1x128xf32>
    %477 = arith.mulf %455, %476 : vector<1x128xf32>
    %478 = arith.addf %475, %477 : vector<1x128xf32>
    %479 = vector.broadcast %128 : f32 to vector<1x128xf32>
    %480 = arith.addf %478, %479 : vector<1x128xf32>
    %c0_258 = arith.constant 0 : index
    %481 = arith.index_cast %134 : i32 to index
    %c0_259 = arith.constant 0 : index
    %482 = vector.load %arg8[%c0_258, %481, %c0_259] : memref<3x1x128xf32, #tpu.memory_space<vmem>>, vector<1x1x128xf32>
    %483 = vector.shape_cast %482 : vector<1x1x128xf32> to vector<1x128xf32>
    %484 = vector.shape_cast %480 : vector<1x128xf32> to vector<1x1x128xf32>
    tpu.vector_store %arg8[%c0_258, %481, %c0_259], %484 {strides = array<i32>} : memref<3x1x128xf32, #tpu.memory_space<vmem>>, vector<1x1x128xf32>,
    %485 = vector.broadcast %112 : f32 to vector<1x128xf32>
    %486 = arith.mulf %266, %485 : vector<1x128xf32>
    %487 = vector.broadcast %113 : f32 to vector<1x128xf32>
    %488 = arith.mulf %293, %487 : vector<1x128xf32>
    %489 = arith.addf %486, %488 : vector<1x128xf32>
    %490 = vector.broadcast %114 : f32 to vector<1x128xf32>
    %491 = arith.mulf %320, %490 : vector<1x128xf32>
    %492 = arith.addf %489, %491 : vector<1x128xf32>
    %493 = vector.broadcast %115 : f32 to vector<1x128xf32>
    %494 = arith.mulf %347, %493 : vector<1x128xf32>
    %495 = arith.addf %492, %494 : vector<1x128xf32>
    %496 = vector.broadcast %116 : f32 to vector<1x128xf32>
    %497 = arith.mulf %374, %496 : vector<1x128xf32>
    %498 = arith.addf %495, %497 : vector<1x128xf32>
    %499 = vector.broadcast %117 : f32 to vector<1x128xf32>
    %500 = arith.mulf %401, %499 : vector<1x128xf32>
    %501 = arith.addf %498, %500 : vector<1x128xf32>
    %502 = vector.broadcast %118 : f32 to vector<1x128xf32>
    %503 = arith.mulf %428, %502 : vector<1x128xf32>
    %504 = arith.addf %501, %503 : vector<1x128xf32>
    %505 = vector.broadcast %119 : f32 to vector<1x128xf32>
    %506 = arith.mulf %455, %505 : vector<1x128xf32>
    %507 = arith.addf %504, %506 : vector<1x128xf32>
    %508 = vector.broadcast %129 : f32 to vector<1x128xf32>
    %509 = arith.addf %507, %508 : vector<1x128xf32>
    %c1_260 = arith.constant 1 : index
    %510 = arith.index_cast %134 : i32 to index
    %c0_261 = arith.constant 0 : index
    %511 = vector.load %arg8[%c1_260, %510, %c0_261] : memref<3x1x128xf32, #tpu.memory_space<vmem>>, vector<1x1x128xf32>
    %512 = vector.shape_cast %511 : vector<1x1x128xf32> to vector<1x128xf32>
    %513 = vector.shape_cast %509 : vector<1x128xf32> to vector<1x1x128xf32>
    tpu.vector_store %arg8[%c1_260, %510, %c0_261], %513 {strides = array<i32>} : memref<3x1x128xf32, #tpu.memory_space<vmem>>, vector<1x1x128xf32>,
    %514 = vector.broadcast %120 : f32 to vector<1x128xf32>
    %515 = arith.mulf %266, %514 : vector<1x128xf32>
    %516 = vector.broadcast %121 : f32 to vector<1x128xf32>
    %517 = arith.mulf %293, %516 : vector<1x128xf32>
    %518 = arith.addf %515, %517 : vector<1x128xf32>
    %519 = vector.broadcast %122 : f32 to vector<1x128xf32>
    %520 = arith.mulf %320, %519 : vector<1x128xf32>
    %521 = arith.addf %518, %520 : vector<1x128xf32>
    %522 = vector.broadcast %123 : f32 to vector<1x128xf32>
    %523 = arith.mulf %347, %522 : vector<1x128xf32>
    %524 = arith.addf %521, %523 : vector<1x128xf32>
    %525 = vector.broadcast %124 : f32 to vector<1x128xf32>
    %526 = arith.mulf %374, %525 : vector<1x128xf32>
    %527 = arith.addf %524, %526 : vector<1x128xf32>
    %528 = vector.broadcast %125 : f32 to vector<1x128xf32>
    %529 = arith.mulf %401, %528 : vector<1x128xf32>
    %530 = arith.addf %527, %529 : vector<1x128xf32>
    %531 = vector.broadcast %126 : f32 to vector<1x128xf32>
    %532 = arith.mulf %428, %531 : vector<1x128xf32>
    %533 = arith.addf %530, %532 : vector<1x128xf32>
    %534 = vector.broadcast %127 : f32 to vector<1x128xf32>
    %535 = arith.mulf %455, %534 : vector<1x128xf32>
    %536 = arith.addf %533, %535 : vector<1x128xf32>
    %537 = vector.broadcast %130 : f32 to vector<1x128xf32>
    %538 = arith.addf %536, %537 : vector<1x128xf32>
    %c2_262 = arith.constant 2 : index
    %539 = arith.index_cast %134 : i32 to index
    %c0_263 = arith.constant 0 : index
    %540 = vector.load %arg8[%c2_262, %539, %c0_263] : memref<3x1x128xf32, #tpu.memory_space<vmem>>, vector<1x1x128xf32>
    %541 = vector.shape_cast %540 : vector<1x1x128xf32> to vector<1x128xf32>
    %542 = vector.shape_cast %538 : vector<1x128xf32> to vector<1x1x128xf32>
    tpu.vector_store %arg8[%c2_262, %539, %c0_263], %542 {strides = array<i32>} : memref<3x1x128xf32, #tpu.memory_space<vmem>>, vector<1x1x128xf32>,
    %c1_i32_264 = arith.constant 1 : i32
    return
  }
  func.func @transform_0(%arg0: i32) -> (i32, i32) {
    %c0_i32 = arith.constant 0 : i32
    %c0_i32_0 = arith.constant 0 : i32
    %c0_i32_1 = arith.constant 0 : i32
    return %c0_i32, %c0_i32_0 : i32, i32
  }
  func.func @transform_1(%arg0: i32) -> i32 {
    %c0_i32 = arith.constant 0 : i32
    %c0_i32_0 = arith.constant 0 : i32
    return %c0_i32 : i32
  }
  func.func @transform_2(%arg0: i32) -> (i32, i32) {
    %c0_i32 = arith.constant 0 : i32
    %c0_i32_0 = arith.constant 0 : i32
    %c0_i32_1 = arith.constant 0 : i32
    return %c0_i32, %c0_i32_0 : i32, i32
  }
  func.func @transform_3(%arg0: i32) -> i32 {
    %c0_i32 = arith.constant 0 : i32
    %c0_i32_0 = arith.constant 0 : i32
    return %c0_i32 : i32
  }
  func.func @transform_4(%arg0: i32) -> (i32, i32) {
    %c0_i32 = arith.constant 0 : i32
    %c0_i32_0 = arith.constant 0 : i32
    %c0_i32_1 = arith.constant 0 : i32
    return %c0_i32, %c0_i32_0 : i32, i32
  }
  func.func @transform_5(%arg0: i32) -> i32 {
    %c0_i32 = arith.constant 0 : i32
    %c0_i32_0 = arith.constant 0 : i32
    return %c0_i32 : i32
  }
  func.func @transform_6(%arg0: i32) -> (i32, i32, i32) {
    %c0_i32 = arith.constant 0 : i32
    %c0_i32_0 = arith.constant 0 : i32
    %c0_i32_1 = arith.constant 0 : i32
    return %c0_i32, %arg0, %c0_i32_0 : i32, i32, i32
  }
  func.func @transform_7(%arg0: i32) -> (i32, i32, i32) {
    %c0_i32 = arith.constant 0 : i32
    %c0_i32_0 = arith.constant 0 : i32
    %c0_i32_1 = arith.constant 0 : i32
    return %c0_i32, %arg0, %c0_i32_0 : i32, i32, i32
  }
}

</mosaic_0001>

<llo_original>
// kernel: tpu_custom_call.1
$region0: #{tpu_custom_call.1}
  #allocation0 [shape = 'u32[]', space=smem, size = 0x4, offset = 0x4, fixed_abs, tag = 'smem constant byte address 0x4 - core index']
  #allocation1 [shape = 'u32[144,128]{1,0:T(1,128)}', space=vmem, size = 0x12000, scoped, tag = 'internal scratch']
  %s0 = inlined_call_operand.vmem [shape: f32[8,3], index: 0, kind: input, shape index: {}]
  %s1 = inlined_call_operand.hbm [shape: f32[8], index: 1, kind: input, shape index: {}]
  %s2 = inlined_call_operand.vmem [shape: f32[8,8], index: 2, kind: input, shape index: {}]
  %s3 = inlined_call_operand.vmem [shape: f32[8], index: 3, kind: input, shape index: {}]
  %s4 = inlined_call_operand.vmem [shape: f32[3,8], index: 4, kind: input, shape index: {}]
  %s5 = inlined_call_operand.vmem [shape: f32[3], index: 5, kind: input, shape index: {}]
  %s6 = inlined_call_operand.vmem [shape: f32[3,1,128], index: 6, kind: input, shape index: {}]
  %s7 = inlined_call_operand.hbm [shape: f32[3,1,128], index: 7, kind: output, shape index: {}]
  %s8 = sld [smem:[#allocation0]]
  $region62: #{tpu_custom_call.1} parent=0
    _
  %s10 = ssub.s32 1, %s8
  %s11 = scalar_select 0, %s10, %s8
  $region1: #{tpu_custom_call.1} parent=0
    #allocation2 [shape = 'u8[4096]{0}', space=smem, size = 0x1000, scoped, tag = 'input window, operand 0, single buffered']
    #allocation3 [shape = 's32[1]{0}', space=sflag, size = 0x4, scoped, tag = 'scoped memory for tpu_custom_call.1']
    #allocation4 [shape = 's32[1]{0}', space=sflag, size = 0x4, scoped, tag = 'scoped memory for tpu_custom_call.1']
    #allocation5 [shape = 's32[1]{0}', space=sflag, size = 0x4, scoped, tag = 'scoped memory for tpu_custom_call.1']
    #allocation6 [shape = 'u8[512]{0}', space=smem, size = 0x200, scoped, tag = 'input window, operand 1, single buffered']
    #allocation7 [shape = 'u8[4096]{0}', space=smem, size = 0x1000, scoped, tag = 'input window, operand 2, single buffered']
    #allocation8 [shape = 's32[1]{0}', space=sflag, size = 0x4, scoped, tag = 'scoped memory for tpu_custom_call.1']
    #allocation9 [shape = 'u8[512]{0}', space=smem, size = 0x200, scoped, tag = 'input window, operand 3, single buffered']
    #allocation10 [shape = 'u8[2048]{0}', space=smem, size = 0x800, scoped, tag = 'input window, operand 4, single buffered']
    #allocation11 [shape = 's32[1]{0}', space=sflag, size = 0x4, scoped, tag = 'scoped memory for tpu_custom_call.1']
    #allocation12 [shape = 'u8[512]{0}', space=smem, size = 0x200, scoped, tag = 'input window, operand 5, single buffered']
    #allocation13 [shape = 'u8[1536]{0}', space=vmem, size = 0x800, scoped, tag = 'output window, operand 0, single buffered']
    %12 = vsyncpa [#allocation5], 0
    %13 = vsyncpa [#allocation4], 0
    %14 = vsyncpa [#allocation8], 0
    %15 = vsyncpa [#allocation11], 0
    %16 = vsyncpa [#allocation3], 0
    // Predicated region
    $region2: #{tpu_custom_call.1} parent=1 // pred_check
      _
    $region3: #{tpu_custom_call.1} parent=1 // pred_check_branch
      %18 = sbr.rel (0) target = $region5
    $region4: #{tpu_custom_call.1} parent=1 // pred_region
      %s20 = ssub.s32 128, 128
      %21 = vsyncadd [#allocation5], %s20
      %s23 = sshll.u32 %s0, 4
      %s24 = int_to_ptr.vmem [resolvable:$true] %s23
      %26 = dma.vmem_to_smem %s24, 128, [#allocation2], [#allocation5]
    $region5: #{tpu_custom_call.1} parent=1 // pred_fallthru
      _
    // Predicated region
    $region6: #{tpu_custom_call.1} parent=1 // pred_check
      _
    $region7: #{tpu_custom_call.1} parent=1 // pred_check_branch
      %28 = sbr.rel (0) target = $region9
    $region8: #{tpu_custom_call.1} parent=1 // pred_region
      %s30 = ssub.s32 16, 16
      %31 = vsyncadd [#allocation4], %s30
      %34 = dma.hbm_to_smem %s1, 16, [#allocation6], [#allocation4]
    $region9: #{tpu_custom_call.1} parent=1 // pred_fallthru
      _
    // Predicated region
    $region10: #{tpu_custom_call.1} parent=1 // pred_check
      _
    $region11: #{tpu_custom_call.1} parent=1 // pred_check_branch
      %36 = sbr.rel (0) target = $region13
    $region12: #{tpu_custom_call.1} parent=1 // pred_region
      %s38 = ssub.s32 128, 128
      %39 = vsyncadd [#allocation8], %s38
      %s41 = sshll.u32 %s2, 4
      %s42 = int_to_ptr.vmem [resolvable:$true] %s41
      %44 = dma.vmem_to_smem %s42, 128, [#allocation7], [#allocation8]
    $region13: #{tpu_custom_call.1} parent=1 // pred_fallthru
      _
    // Predicated region
    $region14: #{tpu_custom_call.1} parent=1 // pred_check
      _
    $region15: #{tpu_custom_call.1} parent=1 // pred_check_branch
      %46 = sbr.rel (0) target = $region17
    $region16: #{tpu_custom_call.1} parent=1 // pred_region
      %s48 = ssub.s32 16, 16
      %49 = vsyncadd [#allocation8], %s48
      %s51 = sshll.u32 %s3, 4
      %s52 = int_to_ptr.vmem [resolvable:$true] %s51
      %54 = dma.vmem_to_smem %s52, 16, [#allocation9], [#allocation8]
    $region17: #{tpu_custom_call.1} parent=1 // pred_fallthru
      _
    // Predicated region
    $region18: #{tpu_custom_call.1} parent=1 // pred_check
      _
    $region19: #{tpu_custom_call.1} parent=1 // pred_check_branch
      %56 = sbr.rel (0) target = $region21
    $region20: #{tpu_custom_call.1} parent=1 // pred_region
      %s58 = ssub.s32 64, 64
      %59 = vsyncadd [#allocation11], %s58
      %s61 = sshll.u32 %s4, 4
      %s62 = int_to_ptr.vmem [resolvable:$true] %s61
      %64 = dma.vmem_to_smem %s62, 64, [#allocation10], [#allocation11]
    $region21: #{tpu_custom_call.1} parent=1 // pred_fallthru
      _
    // Predicated region
    $region22: #{tpu_custom_call.1} parent=1 // pred_check
      _
    $region23: #{tpu_custom_call.1} parent=1 // pred_check_branch
      %66 = sbr.rel (0) target = $region25
    $region24: #{tpu_custom_call.1} parent=1 // pred_region
      %s68 = ssub.s32 16, 16
      %69 = vsyncadd [#allocation11], %s68
      %s71 = sshll.u32 %s5, 4
      %s72 = int_to_ptr.vmem [resolvable:$true] %s71
      %74 = dma.vmem_to_smem %s72, 16, [#allocation12], [#allocation11]
    $region25: #{tpu_custom_call.1} parent=1 // pred_fallthru
      _
    // Predicated region
    $region26: #{tpu_custom_call.1} parent=1 // pred_check
      _
    $region27: #{tpu_custom_call.1} parent=1 // pred_check_branch
      %76 = sbr.rel (0) target = $region29
    $region28: #{tpu_custom_call.1} parent=1 // pred_region
      _
    $region29: #{tpu_custom_call.1} parent=1 // pred_fallthru
      _
    // Predicated region
    $region30: #{tpu_custom_call.1} parent=1 // pred_check
      _
    $region31: #{tpu_custom_call.1} parent=1 // pred_check_branch
      %78 = sbr.rel (0) target = $region33
    $region32: #{tpu_custom_call.1} parent=1 // pred_region
      %79 = dma.done [#allocation5], 128
    $region33: #{tpu_custom_call.1} parent=1 // pred_fallthru
      _
    // Predicated region
    $region34: #{tpu_custom_call.1} parent=1 // pred_check
      _
    $region35: #{tpu_custom_call.1} parent=1 // pred_check_branch
      %81 = sbr.rel (0) target = $region37
    $region36: #{tpu_custom_call.1} parent=1 // pred_region
      %82 = dma.done [#allocation4], 16
    $region37: #{tpu_custom_call.1} parent=1 // pred_fallthru
      _
    // Predicated region
    $region38: #{tpu_custom_call.1} parent=1 // pred_check
      _
    $region39: #{tpu_custom_call.1} parent=1 // pred_check_branch
      %84 = sbr.rel (0) target = $region41
    $region40: #{tpu_custom_call.1} parent=1 // pred_region
      %85 = dma.done [#allocation8], 128
    $region41: #{tpu_custom_call.1} parent=1 // pred_fallthru
      _
    // Predicated region
    $region42: #{tpu_custom_call.1} parent=1 // pred_check
      _
    $region43: #{tpu_custom_call.1} parent=1 // pred_check_branch
      %87 = sbr.rel (0) target = $region45
    $region44: #{tpu_custom_call.1} parent=1 // pred_region
      %88 = dma.done [#allocation8], 16
    $region45: #{tpu_custom_call.1} parent=1 // pred_fallthru
      _
    // Predicated region
    $region46: #{tpu_custom_call.1} parent=1 // pred_check
      _
    $region47: #{tpu_custom_call.1} parent=1 // pred_check_branch
      %90 = sbr.rel (0) target = $region49
    $region48: #{tpu_custom_call.1} parent=1 // pred_region
      %91 = dma.done [#allocation11], 64
    $region49: #{tpu_custom_call.1} parent=1 // pred_fallthru
      _
    // Predicated region
    $region50: #{tpu_custom_call.1} parent=1 // pred_check
      _
    $region51: #{tpu_custom_call.1} parent=1 // pred_check_branch
      %93 = sbr.rel (0) target = $region53
    $region52: #{tpu_custom_call.1} parent=1 // pred_region
      %94 = dma.done [#allocation11], 16
    $region53: #{tpu_custom_call.1} parent=1 // pred_fallthru
      _
    %95 = sfence
    %s96 = sld [smem:[#allocation2]]
    %s97 = sld [smem:[#allocation2 + $0x1]]
    %s98 = sld [smem:[#allocation2 + $0x2]]
    %s99 = sld [smem:[#allocation2 + $0x80]]
    %s100 = sld [smem:[#allocation2 + $0x81]]
    %s101 = sld [smem:[#allocation2 + $0x82]]
    %s102 = sld [smem:[#allocation2 + $0x100]]
    %s103 = sld [smem:[#allocation2 + $0x101]]
    %s104 = sld [smem:[#allocation2 + $0x102]]
    %s105 = sld [smem:[#allocation2 + $0x180]]
    %s106 = sld [smem:[#allocation2 + $0x181]]
    %s107 = sld [smem:[#allocation2 + $0x182]]
    %s108 = sld [smem:[#allocation2 + $0x200]]
    %s109 = sld [smem:[#allocation2 + $0x201]]
    %s110 = sld [smem:[#allocation2 + $0x202]]
    %s111 = sld [smem:[#allocation2 + $0x280]]
    %s112 = sld [smem:[#allocation2 + $0x281]]
    %s113 = sld [smem:[#allocation2 + $0x282]]
    %s114 = sld [smem:[#allocation2 + $0x300]]
    %s115 = sld [smem:[#allocation2 + $0x301]]
    %s116 = sld [smem:[#allocation2 + $0x302]]
    %s117 = sld [smem:[#allocation2 + $0x380]]
    %s118 = sld [smem:[#allocation2 + $0x381]]
    %s119 = sld [smem:[#allocation2 + $0x382]]
    %s120 = sld [smem:[#allocation6]]
    %s121 = sld [smem:[#allocation6 + $0x1]]
    %s122 = sld [smem:[#allocation6 + $0x2]]
    %s123 = sld [smem:[#allocation6 + $0x3]]
    %s124 = sld [smem:[#allocation6 + $0x4]]
    %s125 = sld [smem:[#allocation6 + $0x5]]
    %s126 = sld [smem:[#allocation6 + $0x6]]
    %s127 = sld [smem:[#allocation6 + $0x7]]
    %s128 = sld [smem:[#allocation7]]
    %s129 = sld [smem:[#allocation7 + $0x1]]
    %s130 = sld [smem:[#allocation7 + $0x2]]
    %s131 = sld [smem:[#allocation7 + $0x3]]
    %s132 = sld [smem:[#allocation7 + $0x4]]
    %s133 = sld [smem:[#allocation7 + $0x5]]
    %s134 = sld [smem:[#allocation7 + $0x6]]
    %s135 = sld [smem:[#allocation7 + $0x7]]
    %s136 = sld [smem:[#allocation7 + $0x80]]
    %s137 = sld [smem:[#allocation7 + $0x81]]
    %s138 = sld [smem:[#allocation7 + $0x82]]
    %s139 = sld [smem:[#allocation7 + $0x83]]
    %s140 = sld [smem:[#allocation7 + $0x84]]
    %s141 = sld [smem:[#allocation7 + $0x85]]
    %s142 = sld [smem:[#allocation7 + $0x86]]
    %s143 = sld [smem:[#allocation7 + $0x87]]
    %s144 = sld [smem:[#allocation7 + $0x100]]
    %s145 = sld [smem:[#allocation7 + $0x101]]
    %s146 = sld [smem:[#allocation7 + $0x102]]
    %s147 = sld [smem:[#allocation7 + $0x103]]
    %s148 = sld [smem:[#allocation7 + $0x104]]
    %s149 = sld [smem:[#allocation7 + $0x105]]
    %s150 = sld [smem:[#allocation7 + $0x106]]
    %s151 = sld [smem:[#allocation7 + $0x107]]
    %s152 = sld [smem:[#allocation7 + $0x180]]
    %s153 = sld [smem:[#allocation7 + $0x181]]
    %s154 = sld [smem:[#allocation7 + $0x182]]
    %s155 = sld [smem:[#allocation7 + $0x183]]
    %s156 = sld [smem:[#allocation7 + $0x184]]
    %s157 = sld [smem:[#allocation7 + $0x185]]
    %s158 = sld [smem:[#allocation7 + $0x186]]
    %s159 = sld [smem:[#allocation7 + $0x187]]
    %s160 = sld [smem:[#allocation7 + $0x200]]
    %s161 = sld [smem:[#allocation7 + $0x201]]
    %s162 = sld [smem:[#allocation7 + $0x202]]
    %s163 = sld [smem:[#allocation7 + $0x203]]
    %s164 = sld [smem:[#allocation7 + $0x204]]
    %s165 = sld [smem:[#allocation7 + $0x205]]
    %s166 = sld [smem:[#allocation7 + $0x206]]
    %s167 = sld [smem:[#allocation7 + $0x207]]
    %s168 = sld [smem:[#allocation7 + $0x280]]
    %s169 = sld [smem:[#allocation7 + $0x281]]
    %s170 = sld [smem:[#allocation7 + $0x282]]
    %s171 = sld [smem:[#allocation7 + $0x283]]
    %s172 = sld [smem:[#allocation7 + $0x284]]
    %s173 = sld [smem:[#allocation7 + $0x285]]
    %s174 = sld [smem:[#allocation7 + $0x286]]
    %s175 = sld [smem:[#allocation7 + $0x287]]
    %s176 = sld [smem:[#allocation7 + $0x300]]
    %s177 = sld [smem:[#allocation7 + $0x301]]
    %s178 = sld [smem:[#allocation7 + $0x302]]
    %s179 = sld [smem:[#allocation7 + $0x303]]
    %s180 = sld [smem:[#allocation7 + $0x304]]
    %s181 = sld [smem:[#allocation7 + $0x305]]
    %s182 = sld [smem:[#allocation7 + $0x306]]
    %s183 = sld [smem:[#allocation7 + $0x307]]
    %s184 = sld [smem:[#allocation7 + $0x380]]
    %s185 = sld [smem:[#allocation7 + $0x381]]
    %s186 = sld [smem:[#allocation7 + $0x382]]
    %s187 = sld [smem:[#allocation7 + $0x383]]
    %s188 = sld [smem:[#allocation7 + $0x384]]
    %s189 = sld [smem:[#allocation7 + $0x385]]
    %s190 = sld [smem:[#allocation7 + $0x386]]
    %s191 = sld [smem:[#allocation7 + $0x387]]
    %s192 = sld [smem:[#allocation9]]
    %s193 = sld [smem:[#allocation9 + $0x1]]
    %s194 = sld [smem:[#allocation9 + $0x2]]
    %s195 = sld [smem:[#allocation9 + $0x3]]
    %s196 = sld [smem:[#allocation9 + $0x4]]
    %s197 = sld [smem:[#allocation9 + $0x5]]
    %s198 = sld [smem:[#allocation9 + $0x6]]
    %s199 = sld [smem:[#allocation9 + $0x7]]
    %s200 = sld [smem:[#allocation10]]
    %s201 = sld [smem:[#allocation10 + $0x1]]
    %s202 = sld [smem:[#allocation10 + $0x2]]
    %s203 = sld [smem:[#allocation10 + $0x3]]
    %s204 = sld [smem:[#allocation10 + $0x4]]
    %s205 = sld [smem:[#allocation10 + $0x5]]
    %s206 = sld [smem:[#allocation10 + $0x6]]
    %s207 = sld [smem:[#allocation10 + $0x7]]
    %s208 = sld [smem:[#allocation10 + $0x80]]
    %s209 = sld [smem:[#allocation10 + $0x81]]
    %s210 = sld [smem:[#allocation10 + $0x82]]
    %s211 = sld [smem:[#allocation10 + $0x83]]
    %s212 = sld [smem:[#allocation10 + $0x84]]
    %s213 = sld [smem:[#allocation10 + $0x85]]
    %s214 = sld [smem:[#allocation10 + $0x86]]
    %s215 = sld [smem:[#allocation10 + $0x87]]
    %s216 = sld [smem:[#allocation10 + $0x100]]
    %s217 = sld [smem:[#allocation10 + $0x101]]
    %s218 = sld [smem:[#allocation10 + $0x102]]
    %s219 = sld [smem:[#allocation10 + $0x103]]
    %s220 = sld [smem:[#allocation10 + $0x104]]
    %s221 = sld [smem:[#allocation10 + $0x105]]
    %s222 = sld [smem:[#allocation10 + $0x106]]
    %s223 = sld [smem:[#allocation10 + $0x107]]
    %s224 = sld [smem:[#allocation12]]
    %s225 = sld [smem:[#allocation12 + $0x1]]
    %s226 = sld [smem:[#allocation12 + $0x2]]
    %v227 = vld [vmem:[%s6] sm:$0x1]
    %s228 = sadd.s32 0, 1
    %s229 = scalar_lea.vmem %s6, %s228
    %v230 = vld [vmem:[%s229] sm:$0x1]
    %s231 = sadd.s32 0, 2
    %s232 = scalar_lea.vmem %s6, %s231
    %v233 = vld [vmem:[%s232] sm:$0x1]
    %v234 = vstv %s96
    %v235 = vmul.f32 %v227, %v234
    %v236 = vstv %s97
    %v237 = vmul.f32 %v230, %v236
    %v238 = vadd.f32 %v235, %v237
    %v239 = vstv %s98
    %v240 = vmul.f32 %v233, %v239
    %v241 = vadd.f32 %v238, %v240
    %v242 = vstv %s120
    %v243 = vadd.f32 %v241, %v242
    %v244 = vmax.f32 %v243, 0.0
    %v245 = vstv %s99
    %v246 = vmul.f32 %v227, %v245
    %v247 = vstv %s100
    %v248 = vmul.f32 %v230, %v247
    %v249 = vadd.f32 %v246, %v248
    %v250 = vstv %s101
    %v251 = vmul.f32 %v233, %v250
    %v252 = vadd.f32 %v249, %v251
    %v253 = vstv %s121
    %v254 = vadd.f32 %v252, %v253
    %v255 = vmax.f32 %v254, 0.0
    %v256 = vstv %s102
    %v257 = vmul.f32 %v227, %v256
    %v258 = vstv %s103
    %v259 = vmul.f32 %v230, %v258
    %v260 = vadd.f32 %v257, %v259
    %v261 = vstv %s104
    %v262 = vmul.f32 %v233, %v261
    %v263 = vadd.f32 %v260, %v262
    %v264 = vstv %s122
    %v265 = vadd.f32 %v263, %v264
    %v266 = vmax.f32 %v265, 0.0
    %v267 = vstv %s105
    %v268 = vmul.f32 %v227, %v267
    %v269 = vstv %s106
    %v270 = vmul.f32 %v230, %v269
    %v271 = vadd.f32 %v268, %v270
    %v272 = vstv %s107
    %v273 = vmul.f32 %v233, %v272
    %v274 = vadd.f32 %v271, %v273
    %v275 = vstv %s123
    %v276 = vadd.f32 %v274, %v275
    %v277 = vmax.f32 %v276, 0.0
    %v278 = vstv %s108
    %v279 = vmul.f32 %v227, %v278
    %v280 = vstv %s109
    %v281 = vmul.f32 %v230, %v280
    %v282 = vadd.f32 %v279, %v281
    %v283 = vstv %s110
    %v284 = vmul.f32 %v233, %v283
    %v285 = vadd.f32 %v282, %v284
    %v286 = vstv %s124
    %v287 = vadd.f32 %v285, %v286
    %v288 = vmax.f32 %v287, 0.0
    %v289 = vstv %s111
    %v290 = vmul.f32 %v227, %v289
    %v291 = vstv %s112
    %v292 = vmul.f32 %v230, %v291
    %v293 = vadd.f32 %v290, %v292
    %v294 = vstv %s113
    %v295 = vmul.f32 %v233, %v294
    %v296 = vadd.f32 %v293, %v295
    %v297 = vstv %s125
    %v298 = vadd.f32 %v296, %v297
    %v299 = vmax.f32 %v298, 0.0
    %v300 = vstv %s114
    %v301 = vmul.f32 %v227, %v300
    %v302 = vstv %s115
    %v303 = vmul.f32 %v230, %v302
    %v304 = vadd.f32 %v301, %v303
    %v305 = vstv %s116
    %v306 = vmul.f32 %v233, %v305
    %v307 = vadd.f32 %v304, %v306
    %v308 = vstv %s126
    %v309 = vadd.f32 %v307, %v308
    %v310 = vmax.f32 %v309, 0.0
    %v311 = vstv %s117
    %v312 = vmul.f32 %v227, %v311
    %v313 = vstv %s118
    %v314 = vmul.f32 %v230, %v313
    %v315 = vadd.f32 %v312, %v314
    %v316 = vstv %s119
    %v317 = vmul.f32 %v233, %v316
    %v318 = vadd.f32 %v315, %v317
    %v319 = vstv %s127
    %v320 = vadd.f32 %v318, %v319
    %v321 = vmax.f32 %v320, 0.0
    %v322 = vstv %s128
    %v323 = vmul.f32 %v244, %v322
    %v324 = vstv %s129
    %v325 = vmul.f32 %v255, %v324
    %v326 = vadd.f32 %v323, %v325
    %v327 = vstv %s130
    %v328 = vmul.f32 %v266, %v327
    %v329 = vadd.f32 %v326, %v328
    %v330 = vstv %s131
    %v331 = vmul.f32 %v277, %v330
    %v332 = vadd.f32 %v329, %v331
    %v333 = vstv %s132
    %v334 = vmul.f32 %v288, %v333
    %v335 = vadd.f32 %v332, %v334
    %v336 = vstv %s133
    %v337 = vmul.f32 %v299, %v336
    %v338 = vadd.f32 %v335, %v337
    %v339 = vstv %s134
    %v340 = vmul.f32 %v310, %v339
    %v341 = vadd.f32 %v338, %v340
    %v342 = vstv %s135
    %v343 = vmul.f32 %v321, %v342
    %v344 = vadd.f32 %v341, %v343
    %v345 = vstv %s192
    %v346 = vadd.f32 %v344, %v345
    %v347 = vmax.f32 %v346, 0.0
    %v348 = vstv %s136
    %v349 = vmul.f32 %v244, %v348
    %v350 = vstv %s137
    %v351 = vmul.f32 %v255, %v350
    %v352 = vadd.f32 %v349, %v351
    %v353 = vstv %s138
    %v354 = vmul.f32 %v266, %v353
    %v355 = vadd.f32 %v352, %v354
    %v356 = vstv %s139
    %v357 = vmul.f32 %v277, %v356
    %v358 = vadd.f32 %v355, %v357
    %v359 = vstv %s140
    %v360 = vmul.f32 %v288, %v359
    %v361 = vadd.f32 %v358, %v360
    %v362 = vstv %s141
    %v363 = vmul.f32 %v299, %v362
    %v364 = vadd.f32 %v361, %v363
    %v365 = vstv %s142
    %v366 = vmul.f32 %v310, %v365
    %v367 = vadd.f32 %v364, %v366
    %v368 = vstv %s143
    %v369 = vmul.f32 %v321, %v368
    %v370 = vadd.f32 %v367, %v369
    %v371 = vstv %s193
    %v372 = vadd.f32 %v370, %v371
    %v373 = vmax.f32 %v372, 0.0
    %v374 = vstv %s144
    %v375 = vmul.f32 %v244, %v374
    %v376 = vstv %s145
    %v377 = vmul.f32 %v255, %v376
    %v378 = vadd.f32 %v375, %v377
    %v379 = vstv %s146
    %v380 = vmul.f32 %v266, %v379
    %v381 = vadd.f32 %v378, %v380
    %v382 = vstv %s147
    %v383 = vmul.f32 %v277, %v382
    %v384 = vadd.f32 %v381, %v383
    %v385 = vstv %s148
    %v386 = vmul.f32 %v288, %v385
    %v387 = vadd.f32 %v384, %v386
    %v388 = vstv %s149
    %v389 = vmul.f32 %v299, %v388
    %v390 = vadd.f32 %v387, %v389
    %v391 = vstv %s150
    %v392 = vmul.f32 %v310, %v391
    %v393 = vadd.f32 %v390, %v392
    %v394 = vstv %s151
    %v395 = vmul.f32 %v321, %v394
    %v396 = vadd.f32 %v393, %v395
    %v397 = vstv %s194
    %v398 = vadd.f32 %v396, %v397
    %v399 = vmax.f32 %v398, 0.0
    %v400 = vstv %s152
    %v401 = vmul.f32 %v244, %v400
    %v402 = vstv %s153
    %v403 = vmul.f32 %v255, %v402
    %v404 = vadd.f32 %v401, %v403
    %v405 = vstv %s154
    %v406 = vmul.f32 %v266, %v405
    %v407 = vadd.f32 %v404, %v406
    %v408 = vstv %s155
    %v409 = vmul.f32 %v277, %v408
    %v410 = vadd.f32 %v407, %v409
    %v411 = vstv %s156
    %v412 = vmul.f32 %v288, %v411
    %v413 = vadd.f32 %v410, %v412
    %v414 = vstv %s157
    %v415 = vmul.f32 %v299, %v414
    %v416 = vadd.f32 %v413, %v415
    %v417 = vstv %s158
    %v418 = vmul.f32 %v310, %v417
    %v419 = vadd.f32 %v416, %v418
    %v420 = vstv %s159
    %v421 = vmul.f32 %v321, %v420
    %v422 = vadd.f32 %v419, %v421
    %v423 = vstv %s195
    %v424 = vadd.f32 %v422, %v423
    %v425 = vmax.f32 %v424, 0.0
    %v426 = vstv %s160
    %v427 = vmul.f32 %v244, %v426
    %v428 = vstv %s161
    %v429 = vmul.f32 %v255, %v428
    %v430 = vadd.f32 %v427, %v429
    %v431 = vstv %s162
    %v432 = vmul.f32 %v266, %v431
    %v433 = vadd.f32 %v430, %v432
    %v434 = vstv %s163
    %v435 = vmul.f32 %v277, %v434
    %v436 = vadd.f32 %v433, %v435
    %v437 = vstv %s164
    %v438 = vmul.f32 %v288, %v437
    %v439 = vadd.f32 %v436, %v438
    %v440 = vstv %s165
    %v441 = vmul.f32 %v299, %v440
    %v442 = vadd.f32 %v439, %v441
    %v443 = vstv %s166
    %v444 = vmul.f32 %v310, %v443
    %v445 = vadd.f32 %v442, %v444
    %v446 = vstv %s167
    %v447 = vmul.f32 %v321, %v446
    %v448 = vadd.f32 %v445, %v447
    %v449 = vstv %s196
    %v450 = vadd.f32 %v448, %v449
    %v451 = vmax.f32 %v450, 0.0
    %v452 = vstv %s168
    %v453 = vmul.f32 %v244, %v452
    %v454 = vstv %s169
    %v455 = vmul.f32 %v255, %v454
    %v456 = vadd.f32 %v453, %v455
    %v457 = vstv %s170
    %v458 = vmul.f32 %v266, %v457
    %v459 = vadd.f32 %v456, %v458
    %v460 = vstv %s171
    %v461 = vmul.f32 %v277, %v460
    %v462 = vadd.f32 %v459, %v461
    %v463 = vstv %s172
    %v464 = vmul.f32 %v288, %v463
    %v465 = vadd.f32 %v462, %v464
    %v466 = vstv %s173
    %v467 = vmul.f32 %v299, %v466
    %v468 = vadd.f32 %v465, %v467
    %v469 = vstv %s174
    %v470 = vmul.f32 %v310, %v469
    %v471 = vadd.f32 %v468, %v470
    %v472 = vstv %s175
    %v473 = vmul.f32 %v321, %v472
    %v474 = vadd.f32 %v471, %v473
    %v475 = vstv %s197
    %v476 = vadd.f32 %v474, %v475
    %v477 = vmax.f32 %v476, 0.0
    %v478 = vstv %s176
    %v479 = vmul.f32 %v244, %v478
    %v480 = vstv %s177
    %v481 = vmul.f32 %v255, %v480
    %v482 = vadd.f32 %v479, %v481
    %v483 = vstv %s178
    %v484 = vmul.f32 %v266, %v483
    %v485 = vadd.f32 %v482, %v484
    %v486 = vstv %s179
    %v487 = vmul.f32 %v277, %v486
    %v488 = vadd.f32 %v485, %v487
    %v489 = vstv %s180
    %v490 = vmul.f32 %v288, %v489
    %v491 = vadd.f32 %v488, %v490
    %v492 = vstv %s181
    %v493 = vmul.f32 %v299, %v492
    %v494 = vadd.f32 %v491, %v493
    %v495 = vstv %s182
    %v496 = vmul.f32 %v310, %v495
    %v497 = vadd.f32 %v494, %v496
    %v498 = vstv %s183
    %v499 = vmul.f32 %v321, %v498
    %v500 = vadd.f32 %v497, %v499
    %v501 = vstv %s198
    %v502 = vadd.f32 %v500, %v501
    %v503 = vmax.f32 %v502, 0.0
    %v504 = vstv %s184
    %v505 = vmul.f32 %v244, %v504
    %v506 = vstv %s185
    %v507 = vmul.f32 %v255, %v506
    %v508 = vadd.f32 %v505, %v507
    %v509 = vstv %s186
    %v510 = vmul.f32 %v266, %v509
    %v511 = vadd.f32 %v508, %v510
    %v512 = vstv %s187
    %v513 = vmul.f32 %v277, %v512
    %v514 = vadd.f32 %v511, %v513
    %v515 = vstv %s188
    %v516 = vmul.f32 %v288, %v515
    %v517 = vadd.f32 %v514, %v516
    %v518 = vstv %s189
    %v519 = vmul.f32 %v299, %v518
    %v520 = vadd.f32 %v517, %v519
    %v521 = vstv %s190
    %v522 = vmul.f32 %v310, %v521
    %v523 = vadd.f32 %v520, %v522
    %v524 = vstv %s191
    %v525 = vmul.f32 %v321, %v524
    %v526 = vadd.f32 %v523, %v525
    %v527 = vstv %s199
    %v528 = vadd.f32 %v526, %v527
    %v529 = vmax.f32 %v528, 0.0
    %v530 = vstv %s200
    %v531 = vmul.f32 %v347, %v530
    %v532 = vstv %s201
    %v533 = vmul.f32 %v373, %v532
    %v534 = vadd.f32 %v531, %v533
    %v535 = vstv %s202
    %v536 = vmul.f32 %v399, %v535
    %v537 = vadd.f32 %v534, %v536
    %v538 = vstv %s203
    %v539 = vmul.f32 %v425, %v538
    %v540 = vadd.f32 %v537, %v539
    %v541 = vstv %s204
    %v542 = vmul.f32 %v451, %v541
    %v543 = vadd.f32 %v540, %v542
    %v544 = vstv %s205
    %v545 = vmul.f32 %v477, %v544
    %v546 = vadd.f32 %v543, %v545
    %v547 = vstv %s206
    %v548 = vmul.f32 %v503, %v547
    %v549 = vadd.f32 %v546, %v548
    %v550 = vstv %s207
    %v551 = vmul.f32 %v529, %v550
    %v552 = vadd.f32 %v549, %v551
    %v553 = vstv %s224
    %v554 = vadd.f32 %v552, %v553
    %555 = vst [vmem:[#allocation13] sm:$0x1] %v554
    %v556 = vstv %s208
    %v557 = vmul.f32 %v347, %v556
    %v558 = vstv %s209
    %v559 = vmul.f32 %v373, %v558
    %v560 = vadd.f32 %v557, %v559
    %v561 = vstv %s210
    %v562 = vmul.f32 %v399, %v561
    %v563 = vadd.f32 %v560, %v562
    %v564 = vstv %s211
    %v565 = vmul.f32 %v425, %v564
    %v566 = vadd.f32 %v563, %v565
    %v567 = vstv %s212
    %v568 = vmul.f32 %v451, %v567
    %v569 = vadd.f32 %v566, %v568
    %v570 = vstv %s213
    %v571 = vmul.f32 %v477, %v570
    %v572 = vadd.f32 %v569, %v571
    %v573 = vstv %s214
    %v574 = vmul.f32 %v503, %v573
    %v575 = vadd.f32 %v572, %v574
    %v576 = vstv %s215
    %v577 = vmul.f32 %v529, %v576
    %v578 = vadd.f32 %v575, %v577
    %v579 = vstv %s225
    %v580 = vadd.f32 %v578, %v579
    %s581 = scalar_lea.vmem [#allocation13], %s228
    %582 = vst [vmem:[%s581] sm:$0x1] %v580
    %v583 = vstv %s216
    %v584 = vmul.f32 %v347, %v583
    %v585 = vstv %s217
    %v586 = vmul.f32 %v373, %v585
    %v587 = vadd.f32 %v584, %v586
    %v588 = vstv %s218
    %v589 = vmul.f32 %v399, %v588
    %v590 = vadd.f32 %v587, %v589
    %v591 = vstv %s219
    %v592 = vmul.f32 %v425, %v591
    %v593 = vadd.f32 %v590, %v592
    %v594 = vstv %s220
    %v595 = vmul.f32 %v451, %v594
    %v596 = vadd.f32 %v593, %v595
    %v597 = vstv %s221
    %v598 = vmul.f32 %v477, %v597
    %v599 = vadd.f32 %v596, %v598
    %v600 = vstv %s222
    %v601 = vmul.f32 %v503, %v600
    %v602 = vadd.f32 %v599, %v601
    %v603 = vstv %s223
    %v604 = vmul.f32 %v529, %v603
    %v605 = vadd.f32 %v602, %v604
    %v606 = vstv %s226
    %v607 = vadd.f32 %v605, %v606
    %s608 = scalar_lea.vmem [#allocation13], %s231
    %609 = vst [vmem:[%s608] sm:$0x1] %v607
    // Predicated region
    $region54: #{tpu_custom_call.1} parent=1 // pred_check
      _
    $region55: #{tpu_custom_call.1} parent=1 // pred_check_branch
      %611 = sbr.rel (0) target = $region57
    $region56: #{tpu_custom_call.1} parent=1 // pred_region
      %s613 = ssub.s32 48, 48
      %614 = vsyncadd [#allocation3], %s613
      %s615 = sshll.u32 [#allocation13], 4
      %s616 = int_to_ptr.vmem [resolvable:$true] %s615
      %621 = dma.vmem_to_hbm [thread:$0]  %s616, 48, %s7, [#allocation3], 16, 16, 1
    $region57: #{tpu_custom_call.1} parent=1 // pred_fallthru
      _
    // Predicated region
    $region58: #{tpu_custom_call.1} parent=1 // pred_check
      _
    $region59: #{tpu_custom_call.1} parent=1 // pred_check_branch
      %623 = sbr.rel (0) target = $region61
    $region60: #{tpu_custom_call.1} parent=1 // pred_region
      %624 = dma.done [#allocation3], 48
    $region61: #{tpu_custom_call.1} parent=1 // pred_fallthru
      _
    %625 = vsyncpa [#allocation3], 1
    %626 = vsyncpa [#allocation4], 1
    %627 = vsyncpa [#allocation5], 1
    %628 = vsyncpa [#allocation8], 1
    %629 = vsyncpa [#allocation11], 1

</llo_original>
